<compile_context>
chip_gen: v6e
topology: v6e:2x2x1
jax: 0.10.0
libtpu: 0.0.40
codegen_flags: <defaults>
</compile_context>

<pallas_src>
import jax
import jax.numpy as jnp
from jax.experimental import pallas as pl
from jax.experimental.pallas import tpu as pltpu

LANE = 128      # lane padding for feature / hidden / class dims
TILE_M = 128    # row tile of A_hat
TILE_K = 128    # reduction (column) tile of A_hat


def _round_up(x, m):
    return ((x + m - 1) // m) * m


def _pad2d(x, rows, cols):
    return jnp.zeros((rows, cols), x.dtype).at[: x.shape[0], : x.shape[1]].set(x)


# ----------------------------- Pallas kernels ------------------------------

def gcn_layer_kernel(a_ref, x_ref, w_ref, b_ref, o_ref, acc_ref):
    """One GCNConv + ReLU as relu((A_hat @ X) @ W + b).

    grid = (row tiles of A_hat, reduction tiles over A_hat columns).
    The aggregation A_hat @ X accumulates into f32 VMEM scratch over k; the
    feature transform + bias + ReLU happen once in the k==last epilogue.
    """
    k = pl.program_id(1)

    @pl.when(k == 0)
    def _init():
        acc_ref[...] = jnp.zeros_like(acc_ref)

    # bf16 x bf16 -> f32 accumulate on the MXU.
    acc_ref[...] += jnp.dot(a_ref[...], x_ref[...],
                            preferred_element_type=jnp.float32)

    @pl.when(k == pl.num_programs(1) - 1)
    def _finalize():
        h = jnp.dot(acc_ref[...], w_ref[...],
                    preferred_element_type=jnp.float32) + b_ref[...]
        o_ref[...] = jnp.maximum(h, 0.0).astype(o_ref.dtype)


def pool_fc_kernel(p_ref, h_ref, w_ref, b_ref, o_ref, acc_ref):
    """out = (P @ H) @ W_fc + b_fc  (global_mean_pool + Linear), k-tiled over N."""
    k = pl.program_id(0)

    @pl.when(k == 0)
    def _init():
        acc_ref[...] = jnp.zeros_like(acc_ref)

    acc_ref[...] += jnp.dot(p_ref[...], h_ref[...].astype(jnp.float32),
                            preferred_element_type=jnp.float32)

    @pl.when(k == pl.num_programs(0) - 1)
    def _finalize():
        o_ref[...] = jnp.dot(acc_ref[...], w_ref[...],
                             preferred_element_type=jnp.float32) + b_ref[...]


# --------------------------- pallas_call wrappers ---------------------------

def gcn_layer(a_hat, x, w, b, *, tm=TILE_M, tk=TILE_K):
    """relu((A_hat @ X) @ W + b).

    a_hat: (NP, NP) bf16, x: (NP, FP) bf16, w: (FP, HP) f32, b: (1, HP) f32.
    Returns (NP, HP) bf16.
    """
    np_ = a_hat.shape[0]
    fp = x.shape[1]
    hp = w.shape[1]
    grid = (np_ // tm, np_ // tk)

    cost = pl.CostEstimate(
        flops=2 * np_ * np_ * fp + 2 * np_ * fp * hp,
        transcendentals=0,
        bytes_accessed=(a_hat.size * a_hat.dtype.itemsize
                        + x.size * x.dtype.itemsize
                        + w.size * 4 + b.size * 4 + np_ * hp * 2),
    )

    return pl.pallas_call(
        gcn_layer_kernel,
        out_shape=jax.ShapeDtypeStruct((np_, hp), jnp.bfloat16),
        grid_spec=pltpu.PrefetchScalarGridSpec(
            num_scalar_prefetch=0,
            grid=grid,
            in_specs=[
                pl.BlockSpec((tm, tk), lambda i, k: (i, k)),   # A_hat tile (streamed)
                pl.BlockSpec((tk, fp), lambda i, k: (k, 0)),   # X row block
                pl.BlockSpec((fp, hp), lambda i, k: (0, 0)),   # W (VMEM resident)
                pl.BlockSpec((1, hp), lambda i, k: (0, 0)),    # bias
            ],
            out_specs=pl.BlockSpec((tm, hp), lambda i, k: (i, 0)),
            scratch_shapes=[pltpu.VMEM((tm, fp), jnp.float32)],
        ),
        compiler_params=pltpu.CompilerParams(
            # row tiles independent -> shard across TensorCores (v7x megacore);
            # k is the reduction axis -> "arbitrary", innermost.
            dimension_semantics=("parallel", "arbitrary"),
            vmem_limit_bytes=32 * 1024 * 1024,
        ),
        cost_estimate=cost,
    )(a_hat, x, w, b)


def pool_fc(pool_mat, h, w_fc, b_fc, *, tk=TILE_K):
    """out = (P @ H) @ W_fc + b_fc, reduction over node tiles."""
    g = pool_mat.shape[0]
    np_ = pool_mat.shape[1]
    hp = h.shape[1]
    cp = w_fc.shape[1]
    grid = (np_ // tk,)

    cost = pl.CostEstimate(
        flops=2 * g * np_ * hp + 2 * g * hp * cp,
        transcendentals=0,
        bytes_accessed=(pool_mat.size * 4 + h.size * h.dtype.itemsize
                        + w_fc.size * 4 + b_fc.size * 4 + g * cp * 4),
    )

    return pl.pallas_call(
        pool_fc_kernel,
        out_shape=jax.ShapeDtypeStruct((g, cp), jnp.float32),
        grid_spec=pltpu.PrefetchScalarGridSpec(
            num_scalar_prefetch=0,
            grid=grid,
            in_specs=[
                pl.BlockSpec((g, tk), lambda k: (0, k)),    # P block over nodes
                pl.BlockSpec((tk, hp), lambda k: (k, 0)),   # H row block
                pl.BlockSpec((hp, cp), lambda k: (0, 0)),   # W_fc (resident)
                pl.BlockSpec((1, cp), lambda k: (0, 0)),    # b_fc
            ],
            out_specs=pl.BlockSpec((g, cp), lambda k: (0, 0)),
            scratch_shapes=[pltpu.VMEM((g, hp), jnp.float32)],
        ),
        compiler_params=pltpu.CompilerParams(
            dimension_semantics=("arbitrary",),
            vmem_limit_bytes=32 * 1024 * 1024,
        ),
        cost_estimate=cost,
    )(pool_mat, h, w_fc, b_fc)


# ------------------------------- glue (JAX) ---------------------------------

def gcn_normalize(edge_index, num_nodes):
    """Dense D^-1/2 (A + I) D^-1/2 from a [2, E] edge_index (src, dst)."""
    src, dst = edge_index[0], edge_index[1]
    a = jnp.zeros((num_nodes, num_nodes), jnp.float32)
    a = a.at[dst, src].add(1.0)                      # message flows src -> dst
    a = a + jnp.eye(num_nodes, dtype=jnp.float32)    # self loops
    deg = a.sum(axis=1)
    d_inv_sqrt = jnp.where(deg > 0, 1.0 / jnp.sqrt(deg), 0.0)
    return d_inv_sqrt[:, None] * a * d_inv_sqrt[None, :]


def mean_pool_matrix(batch, num_graphs):
    onehot = (batch[None, :] == jnp.arange(num_graphs)[:, None]).astype(jnp.float32)
    counts = jnp.maximum(onehot.sum(axis=1, keepdims=True), 1.0)
    return onehot / counts


def init_params(key, num_node_features=1, hidden_channels=16, num_classes=2):
    k1, k2, k3 = jax.random.split(key, 3)

    def glorot(k, fan_in, fan_out):
        lim = jnp.sqrt(6.0 / (fan_in + fan_out))
        return jax.random.uniform(k, (fan_in, fan_out), jnp.float32, -lim, lim)

    return {
        "w1": glorot(k1, num_node_features, hidden_channels),
        "b1": jnp.zeros((1, hidden_channels), jnp.float32),
        "w2": glorot(k2, hidden_channels, hidden_channels),
        "b2": jnp.zeros((1, hidden_channels), jnp.float32),
        "wfc": glorot(k3, hidden_channels, num_classes),
        "bfc": jnp.zeros((1, num_classes), jnp.float32),
    }


def prepare_inputs(a_hat, x, pool_mat, params):
    """Pad nodes to a tile multiple and feature dims to the 128-lane width.

    Zero-padding is exact: padded A_hat / P columns are zero so garbage rows
    never propagate, and zero-padded weight rows/cols contribute nothing.
    """
    n = a_hat.shape[0]
    f = x.shape[1]
    h = params["w1"].shape[1]
    c = params["wfc"].shape[1]

    np_ = _round_up(n, max(TILE_M, TILE_K))
    fp = _round_up(f, LANE)
    hp = _round_up(h, LANE)
    cp = _round_up(c, LANE)

    a_bf = _pad2d(a_hat, np_, np_).astype(jnp.bfloat16)
    x_bf = _pad2d(x, np_, fp).astype(jnp.bfloat16)
    p_pad = _pad2d(pool_mat, pool_mat.shape[0], np_)    # keep f32 for exact means

    padded = {
        "w1": _pad2d(params["w1"], fp, hp),
        "b1": _pad2d(params["b1"], 1, hp),
        "w2": _pad2d(params["w2"], hp, hp),
        "b2": _pad2d(params["b2"], 1, hp),
        "wfc": _pad2d(params["wfc"], hp, cp),
        "bfc": _pad2d(params["bfc"], 1, cp),
    }
    return a_bf, x_bf, p_pad, padded


@jax.jit
def gcn_model_forward(a_bf, x_bf, p_pad, padded):
    h1 = gcn_layer(a_bf, x_bf, padded["w1"], padded["b1"])   # conv1 + relu
    # Dropout(p=0.5) is identity at inference (eval mode).
    h2 = gcn_layer(a_bf, h1, padded["w2"], padded["b2"])     # conv2 + relu
    return pool_fc(p_pad, h2, padded["wfc"], padded["bfc"])  # mean pool + fc


# --------------------------------- main --------------------------------------

if __name__ == "__main__":
    key = jax.random.PRNGKey(0)

    num_graphs = 4
    nodes_per_graph = 64
    num_nodes = num_graphs * nodes_per_graph          # 256 -> 2x2 grid of 128-tiles
    num_node_features = 1
    hidden_channels = 16
    num_classes = 2

    kx, kp = jax.random.split(key)
    x = jax.random.normal(kx, (num_nodes, num_node_features), jnp.float32)

    # Each graph is an undirected ring -> both edge directions in edge_index.
    srcs, dsts = [], []
    for g in range(num_graphs):
        base = g * nodes_per_graph
        for i in range(nodes_per_graph):
            a = base + i
            b = base + (i + 1) % nodes_per_graph
            srcs += [a, b]
            dsts += [b, a]
    edge_index = jnp.array([srcs, dsts], dtype=jnp.int32)   # [2, E]

    batch = jnp.repeat(jnp.arange(num_graphs, dtype=jnp.int32), nodes_per_graph)

    a_hat = gcn_normalize(edge_index, num_nodes)
    pool_mat = mean_pool_matrix(batch, num_graphs)
    params = init_params(kp, num_node_features, hidden_channels, num_classes)

    a_bf, x_bf, p_pad, padded = prepare_inputs(a_hat, x, pool_mat, params)

    out_padded = gcn_model_forward(a_bf, x_bf, p_pad, padded)
    out_padded = jax.block_until_ready(out_padded)
    out = out_padded[:, :num_classes]

    # Pure-JAX f32 reference of the original module math (unpadded).
    ref = jnp.maximum(a_hat @ (x @ params["w1"]) + params["b1"], 0.0)
    ref = jnp.maximum(a_hat @ (ref @ params["w2"]) + params["b2"], 0.0)
    ref = pool_mat @ ref @ params["wfc"] + params["bfc"]

    assert out.shape == (num_graphs, num_classes)
    max_err = jnp.max(jnp.abs(out - ref))
    assert jnp.allclose(out, ref, atol=1e-2, rtol=1e-2), (
        f"mismatch vs reference, max abs err = {max_err}")
    print("KERNEL_OK")
</pallas_src>

<mosaic_0001>
module attributes {stable_mosaic.version = 11 : i64} {
  func.func @pool_fc_kernel(%arg0: i32, %arg1: memref<4x128xf32, #tpu.memory_space<vmem>>, %arg2: memref<128x128xbf16, #tpu.memory_space<vmem>>, %arg3: memref<128x128xf32, #tpu.memory_space<vmem>>, %arg4: memref<1x128xf32, #tpu.memory_space<vmem>>, %arg5: memref<4x128xf32, #tpu.memory_space<vmem>>, %arg6: memref<4x128xf32, #tpu.memory_space<vmem>>) attributes {dimension_semantics = [#tpu.dimension_semantics<arbitrary>], iteration_bounds = array<i64: 2>, scalar_prefetch = 0 : i64, scratch_operands = 1 : i64, tpu.core_type = #tpu.core_type<tc>, window_params = [{transform_indices = @transform_0, window_bounds = array<i64: 4, 128>}, {transform_indices = @transform_1, window_bounds = array<i64: 128, 128>}, {pipeline_mode = #tpu.pipeline_mode<synchronous>, transform_indices = @transform_2, window_bounds = array<i64: 128, 128>}, {pipeline_mode = #tpu.pipeline_mode<synchronous>, transform_indices = @transform_3, window_bounds = array<i64: 1, 128>}, {pipeline_mode = #tpu.pipeline_mode<synchronous>, transform_indices = @transform_4, window_bounds = array<i64: 4, 128>}]} {
    %c0_i32 = arith.constant 0 : i32
    %0 = arith.cmpi eq, %arg0, %c0_i32 : i32
    %1 = arith.extui %0 : i1 to i32
    %c0_i32_0 = arith.constant 0 : i32
    %2 = arith.cmpi ne, %1, %c0_i32_0 : i32
    scf.if %2 {
      %cst_9 = arith.constant 0.000000e+00 : f32
      %13 = vector.broadcast %cst_9 : f32 to vector<4x128xf32>
      %c0_10 = arith.constant 0 : index
      %c0_11 = arith.constant 0 : index
      %14 = vector.load %arg6[%c0_10, %c0_11] : memref<4x128xf32, #tpu.memory_space<vmem>>, vector<4x128xf32>
      tpu.vector_store %arg6[%c0_10, %c0_11], %13 {strides = array<i32>} : memref<4x128xf32, #tpu.memory_space<vmem>>, vector<4x128xf32>,
    } else {
    }
    %c0 = arith.constant 0 : index
    %c0_1 = arith.constant 0 : index
    %3 = vector.load %arg6[%c0, %c0_1] : memref<4x128xf32, #tpu.memory_space<vmem>>, vector<4x128xf32>
    %c0_2 = arith.constant 0 : index
    %c0_3 = arith.constant 0 : index
    %4 = vector.load %arg1[%c0_2, %c0_3] : memref<4x128xf32, #tpu.memory_space<vmem>>, vector<4x128xf32>
    %c0_4 = arith.constant 0 : index
    %c0_5 = arith.constant 0 : index
    %5 = vector.load %arg2[%c0_4, %c0_5] : memref<128x128xbf16, #tpu.memory_space<vmem>>, vector<128x128xbf16>
    %6 = arith.extf %5 : vector<128x128xbf16> to vector<128x128xf32>
    %cst = arith.constant dense<0.000000e+00> : vector<4x128xf32>
    %7 = tpu.matmul %4, %6, %cst {dimension_numbers = #tpu.dot_dimension_numbers<[1], [0], [0], [1], [0, 0, 1, 1], [], []>} : vector<4x128xf32>, vector<128x128xf32>, vector<4x128xf32> -> vector<4x128xf32>
    %8 = arith.addf %3, %7 : vector<4x128xf32>
    %c0_6 = arith.constant 0 : index
    %c0_7 = arith.constant 0 : index
    %9 = vector.load %arg6[%c0_6, %c0_7] : memref<4x128xf32, #tpu.memory_space<vmem>>, vector<4x128xf32>
    tpu.vector_store %arg6[%c0_6, %c0_7], %8 {strides = array<i32>} : memref<4x128xf32, #tpu.memory_space<vmem>>, vector<4x128xf32>,
    %c1_i32 = arith.constant 1 : i32
    %10 = arith.cmpi eq, %arg0, %c1_i32 : i32
    %11 = arith.extui %10 : i1 to i32
    %c0_i32_8 = arith.constant 0 : i32
    %12 = arith.cmpi ne, %11, %c0_i32_8 : i32
    scf.if %12 {
      %c0_9 = arith.constant 0 : index
      %c0_10 = arith.constant 0 : index
      %13 = vector.load %arg6[%c0_9, %c0_10] : memref<4x128xf32, #tpu.memory_space<vmem>>, vector<4x128xf32>
      %c0_11 = arith.constant 0 : index
      %c0_12 = arith.constant 0 : index
      %14 = vector.load %arg3[%c0_11, %c0_12] : memref<128x128xf32, #tpu.memory_space<vmem>>, vector<128x128xf32>
      %cst_13 = arith.constant dense<0.000000e+00> : vector<4x128xf32>
      %15 = tpu.matmul %13, %14, %cst_13 {dimension_numbers = #tpu.dot_dimension_numbers<[1], [0], [0], [1], [0, 0, 1, 1], [], []>} : vector<4x128xf32>, vector<128x128xf32>, vector<4x128xf32> -> vector<4x128xf32>
      %c0_14 = arith.constant 0 : index
      %c0_15 = arith.constant 0 : index
      %16 = vector.load %arg4[%c0_14, %c0_15] : memref<1x128xf32, #tpu.memory_space<vmem>>, vector<1x128xf32>
      %17 = vector.broadcast %16 : vector<1x128xf32> to vector<4x128xf32>
      %18 = arith.addf %15, %17 : vector<4x128xf32>
      %c0_16 = arith.constant 0 : index
      %c0_17 = arith.constant 0 : index
      %19 = vector.load %arg5[%c0_16, %c0_17] : memref<4x128xf32, #tpu.memory_space<vmem>>, vector<4x128xf32>
      tpu.vector_store %arg5[%c0_16, %c0_17], %18 {strides = array<i32>} : memref<4x128xf32, #tpu.memory_space<vmem>>, vector<4x128xf32>,
    } else {
    }
    return
  }
  func.func @transform_0(%arg0: i32) -> (i32, i32) {
    %c0_i32 = arith.constant 0 : i32
    %c0_i32_0 = arith.constant 0 : i32
    return %c0_i32, %arg0 : i32, i32
  }
  func.func @transform_1(%arg0: i32) -> (i32, i32) {
    %c0_i32 = arith.constant 0 : i32
    %c0_i32_0 = arith.constant 0 : i32
    return %arg0, %c0_i32 : i32, i32
  }
  func.func @transform_2(%arg0: i32) -> (i32, i32) {
    %c0_i32 = arith.constant 0 : i32
    %c0_i32_0 = arith.constant 0 : i32
    %c0_i32_1 = arith.constant 0 : i32
    return %c0_i32, %c0_i32_0 : i32, i32
  }
  func.func @transform_3(%arg0: i32) -> (i32, i32) {
    %c0_i32 = arith.constant 0 : i32
    %c0_i32_0 = arith.constant 0 : i32
    %c0_i32_1 = arith.constant 0 : i32
    return %c0_i32, %c0_i32_0 : i32, i32
  }
  func.func @transform_4(%arg0: i32) -> (i32, i32) {
    %c0_i32 = arith.constant 0 : i32
    %c0_i32_0 = arith.constant 0 : i32
    %c0_i32_1 = arith.constant 0 : i32
    return %c0_i32, %c0_i32_0 : i32, i32
  }
}

module attributes {stable_mosaic.version = 11 : i64} {
  func.func @gcn_layer_kernel(%arg0: i32, %arg1: i32, %arg2: memref<128x128xbf16, #tpu.memory_space<vmem>>, %arg3: memref<128x128xbf16, #tpu.memory_space<vmem>>, %arg4: memref<128x128xf32, #tpu.memory_space<vmem>>, %arg5: memref<1x128xf32, #tpu.memory_space<vmem>>, %arg6: memref<128x128xbf16, #tpu.memory_space<vmem>>, %arg7: memref<128x128xf32, #tpu.memory_space<vmem>>) attributes {dimension_semantics = [#tpu.dimension_semantics<parallel>, #tpu.dimension_semantics<arbitrary>], iteration_bounds = array<i64: 2, 2>, scalar_prefetch = 0 : i64, scratch_operands = 1 : i64, tpu.core_type = #tpu.core_type<tc>, window_params = [{transform_indices = @transform_0, window_bounds = array<i64: 128, 128>}, {transform_indices = @transform_1, window_bounds = array<i64: 128, 128>}, {pipeline_mode = #tpu.pipeline_mode<synchronous>, transform_indices = @transform_2, window_bounds = array<i64: 128, 128>}, {pipeline_mode = #tpu.pipeline_mode<synchronous>, transform_indices = @transform_3, window_bounds = array<i64: 1, 128>}, {transform_indices = @transform_4, window_bounds = array<i64: 128, 128>}]} {
    %c0_i32 = arith.constant 0 : i32
    %0 = arith.cmpi eq, %arg1, %c0_i32 : i32
    %1 = arith.extui %0 : i1 to i32
    %c0_i32_0 = arith.constant 0 : i32
    %2 = arith.cmpi ne, %1, %c0_i32_0 : i32
    scf.if %2 {
      %cst_9 = arith.constant 0.000000e+00 : f32
      %12 = vector.broadcast %cst_9 : f32 to vector<128x128xf32>
      %c0_10 = arith.constant 0 : index
      %c0_11 = arith.constant 0 : index
      %13 = vector.load %arg7[%c0_10, %c0_11] : memref<128x128xf32, #tpu.memory_space<vmem>>, vector<128x128xf32>
      tpu.vector_store %arg7[%c0_10, %c0_11], %12 {strides = array<i32>} : memref<128x128xf32, #tpu.memory_space<vmem>>, vector<128x128xf32>,
    } else {
    }
    %c0 = arith.constant 0 : index
    %c0_1 = arith.constant 0 : index
    %3 = vector.load %arg7[%c0, %c0_1] : memref<128x128xf32, #tpu.memory_space<vmem>>, vector<128x128xf32>
    %c0_2 = arith.constant 0 : index
    %c0_3 = arith.constant 0 : index
    %4 = vector.load %arg2[%c0_2, %c0_3] : memref<128x128xbf16, #tpu.memory_space<vmem>>, vector<128x128xbf16>
    %c0_4 = arith.constant 0 : index
    %c0_5 = arith.constant 0 : index
    %5 = vector.load %arg3[%c0_4, %c0_5] : memref<128x128xbf16, #tpu.memory_space<vmem>>, vector<128x128xbf16>
    %cst = arith.constant dense<0.000000e+00> : vector<128x128xf32>
    %6 = tpu.matmul %4, %5, %cst {dimension_numbers = #tpu.dot_dimension_numbers<[1], [0], [0], [1], [0, 0, 1, 1], [], []>} : vector<128x128xbf16>, vector<128x128xbf16>, vector<128x128xf32> -> vector<128x128xf32>
    %7 = arith.addf %3, %6 : vector<128x128xf32>
    %c0_6 = arith.constant 0 : index
    %c0_7 = arith.constant 0 : index
    %8 = vector.load %arg7[%c0_6, %c0_7] : memref<128x128xf32, #tpu.memory_space<vmem>>, vector<128x128xf32>
    tpu.vector_store %arg7[%c0_6, %c0_7], %7 {strides = array<i32>} : memref<128x128xf32, #tpu.memory_space<vmem>>, vector<128x128xf32>,
    %c1_i32 = arith.constant 1 : i32
    %9 = arith.cmpi eq, %arg1, %c1_i32 : i32
    %10 = arith.extui %9 : i1 to i32
    %c0_i32_8 = arith.constant 0 : i32
    %11 = arith.cmpi ne, %10, %c0_i32_8 : i32
    scf.if %11 {
      %c0_9 = arith.constant 0 : index
      %c0_10 = arith.constant 0 : index
      %12 = vector.load %arg7[%c0_9, %c0_10] : memref<128x128xf32, #tpu.memory_space<vmem>>, vector<128x128xf32>
      %c0_11 = arith.constant 0 : index
      %c0_12 = arith.constant 0 : index
      %13 = vector.load %arg4[%c0_11, %c0_12] : memref<128x128xf32, #tpu.memory_space<vmem>>, vector<128x128xf32>
      %cst_13 = arith.constant dense<0.000000e+00> : vector<128x128xf32>
      %14 = tpu.matmul %12, %13, %cst_13 {dimension_numbers = #tpu.dot_dimension_numbers<[1], [0], [0], [1], [0, 0, 1, 1], [], []>} : vector<128x128xf32>, vector<128x128xf32>, vector<128x128xf32> -> vector<128x128xf32>
      %c0_14 = arith.constant 0 : index
      %c0_15 = arith.constant 0 : index
      %15 = vector.load %arg5[%c0_14, %c0_15] : memref<1x128xf32, #tpu.memory_space<vmem>>, vector<1x128xf32>
      %16 = vector.broadcast %15 : vector<1x128xf32> to vector<128x128xf32>
      %17 = arith.addf %14, %16 : vector<128x128xf32>
      %cst_16 = arith.constant 0.000000e+00 : f32
      %18 = vector.broadcast %cst_16 : f32 to vector<128x128xf32>
      %19 = arith.maximumf %17, %18 : vector<128x128xf32>
      %20 = arith.truncf %19 : vector<128x128xf32> to vector<128x128xbf16>
      %c0_17 = arith.constant 0 : index
      %c0_18 = arith.constant 0 : index
      %21 = vector.load %arg6[%c0_17, %c0_18] : memref<128x128xbf16, #tpu.memory_space<vmem>>, vector<128x128xbf16>
      tpu.vector_store %arg6[%c0_17, %c0_18], %20 {strides = array<i32>} : memref<128x128xbf16, #tpu.memory_space<vmem>>, vector<128x128xbf16>,
    } else {
    }
    return
  }
  func.func @transform_0(%arg0: i32, %arg1: i32) -> (i32, i32) {
    %c0_i32 = arith.constant 0 : i32
    return %arg0, %arg1 : i32, i32
  }
  func.func @transform_1(%arg0: i32, %arg1: i32) -> (i32, i32) {
    %c0_i32 = arith.constant 0 : i32
    %c0_i32_0 = arith.constant 0 : i32
    return %arg1, %c0_i32 : i32, i32
  }
  func.func @transform_2(%arg0: i32, %arg1: i32) -> (i32, i32) {
    %c0_i32 = arith.constant 0 : i32
    %c0_i32_0 = arith.constant 0 : i32
    %c0_i32_1 = arith.constant 0 : i32
    return %c0_i32, %c0_i32_0 : i32, i32
  }
  func.func @transform_3(%arg0: i32, %arg1: i32) -> (i32, i32) {
    %c0_i32 = arith.constant 0 : i32
    %c0_i32_0 = arith.constant 0 : i32
    %c0_i32_1 = arith.constant 0 : i32
    return %c0_i32, %c0_i32_0 : i32, i32
  }
  func.func @transform_4(%arg0: i32, %arg1: i32) -> (i32, i32) {
    %c0_i32 = arith.constant 0 : i32
    %c0_i32_0 = arith.constant 0 : i32
    return %arg0, %c0_i32 : i32, i32
  }
}

module attributes {stable_mosaic.version = 11 : i64} {
  func.func @gcn_layer_kernel(%arg0: i32, %arg1: i32, %arg2: memref<128x128xbf16, #tpu.memory_space<vmem>>, %arg3: memref<128x128xbf16, #tpu.memory_space<vmem>>, %arg4: memref<128x128xf32, #tpu.memory_space<vmem>>, %arg5: memref<1x128xf32, #tpu.memory_space<vmem>>, %arg6: memref<128x128xbf16, #tpu.memory_space<vmem>>, %arg7: memref<128x128xf32, #tpu.memory_space<vmem>>) attributes {dimension_semantics = [#tpu.dimension_semantics<parallel>, #tpu.dimension_semantics<arbitrary>], iteration_bounds = array<i64: 2, 2>, scalar_prefetch = 0 : i64, scratch_operands = 1 : i64, tpu.core_type = #tpu.core_type<tc>, window_params = [{transform_indices = @transform_0, window_bounds = array<i64: 128, 128>}, {transform_indices = @transform_1, window_bounds = array<i64: 128, 128>}, {pipeline_mode = #tpu.pipeline_mode<synchronous>, transform_indices = @transform_2, window_bounds = array<i64: 128, 128>}, {pipeline_mode = #tpu.pipeline_mode<synchronous>, transform_indices = @transform_3, window_bounds = array<i64: 1, 128>}, {transform_indices = @transform_4, window_bounds = array<i64: 128, 128>}]} {
    %c0_i32 = arith.constant 0 : i32
    %0 = arith.cmpi eq, %arg1, %c0_i32 : i32
    %1 = arith.extui %0 : i1 to i32
    %c0_i32_0 = arith.constant 0 : i32
    %2 = arith.cmpi ne, %1, %c0_i32_0 : i32
    scf.if %2 {
      %cst_9 = arith.constant 0.000000e+00 : f32
      %12 = vector.broadcast %cst_9 : f32 to vector<128x128xf32>
      %c0_10 = arith.constant 0 : index
      %c0_11 = arith.constant 0 : index
      %13 = vector.load %arg7[%c0_10, %c0_11] : memref<128x128xf32, #tpu.memory_space<vmem>>, vector<128x128xf32>
      tpu.vector_store %arg7[%c0_10, %c0_11], %12 {strides = array<i32>} : memref<128x128xf32, #tpu.memory_space<vmem>>, vector<128x128xf32>,
    } else {
    }
    %c0 = arith.constant 0 : index
    %c0_1 = arith.constant 0 : index
    %3 = vector.load %arg7[%c0, %c0_1] : memref<128x128xf32, #tpu.memory_space<vmem>>, vector<128x128xf32>
    %c0_2 = arith.constant 0 : index
    %c0_3 = arith.constant 0 : index
    %4 = vector.load %arg2[%c0_2, %c0_3] : memref<128x128xbf16, #tpu.memory_space<vmem>>, vector<128x128xbf16>
    %c0_4 = arith.constant 0 : index
    %c0_5 = arith.constant 0 : index
    %5 = vector.load %arg3[%c0_4, %c0_5] : memref<128x128xbf16, #tpu.memory_space<vmem>>, vector<128x128xbf16>
    %cst = arith.constant dense<0.000000e+00> : vector<128x128xf32>
    %6 = tpu.matmul %4, %5, %cst {dimension_numbers = #tpu.dot_dimension_numbers<[1], [0], [0], [1], [0, 0, 1, 1], [], []>} : vector<128x128xbf16>, vector<128x128xbf16>, vector<128x128xf32> -> vector<128x128xf32>
    %7 = arith.addf %3, %6 : vector<128x128xf32>
    %c0_6 = arith.constant 0 : index
    %c0_7 = arith.constant 0 : index
    %8 = vector.load %arg7[%c0_6, %c0_7] : memref<128x128xf32, #tpu.memory_space<vmem>>, vector<128x128xf32>
    tpu.vector_store %arg7[%c0_6, %c0_7], %7 {strides = array<i32>} : memref<128x128xf32, #tpu.memory_space<vmem>>, vector<128x128xf32>,
    %c1_i32 = arith.constant 1 : i32
    %9 = arith.cmpi eq, %arg1, %c1_i32 : i32
    %10 = arith.extui %9 : i1 to i32
    %c0_i32_8 = arith.constant 0 : i32
    %11 = arith.cmpi ne, %10, %c0_i32_8 : i32
    scf.if %11 {
      %c0_9 = arith.constant 0 : index
      %c0_10 = arith.constant 0 : index
      %12 = vector.load %arg7[%c0_9, %c0_10] : memref<128x128xf32, #tpu.memory_space<vmem>>, vector<128x128xf32>
      %c0_11 = arith.constant 0 : index
      %c0_12 = arith.constant 0 : index
      %13 = vector.load %arg4[%c0_11, %c0_12] : memref<128x128xf32, #tpu.memory_space<vmem>>, vector<128x128xf32>
      %cst_13 = arith.constant dense<0.000000e+00> : vector<128x128xf32>
      %14 = tpu.matmul %12, %13, %cst_13 {dimension_numbers = #tpu.dot_dimension_numbers<[1], [0], [0], [1], [0, 0, 1, 1], [], []>} : vector<128x128xf32>, vector<128x128xf32>, vector<128x128xf32> -> vector<128x128xf32>
      %c0_14 = arith.constant 0 : index
      %c0_15 = arith.constant 0 : index
      %15 = vector.load %arg5[%c0_14, %c0_15] : memref<1x128xf32, #tpu.memory_space<vmem>>, vector<1x128xf32>
      %16 = vector.broadcast %15 : vector<1x128xf32> to vector<128x128xf32>
      %17 = arith.addf %14, %16 : vector<128x128xf32>
      %cst_16 = arith.constant 0.000000e+00 : f32
      %18 = vector.broadcast %cst_16 : f32 to vector<128x128xf32>
      %19 = arith.maximumf %17, %18 : vector<128x128xf32>
      %20 = arith.truncf %19 : vector<128x128xf32> to vector<128x128xbf16>
      %c0_17 = arith.constant 0 : index
      %c0_18 = arith.constant 0 : index
      %21 = vector.load %arg6[%c0_17, %c0_18] : memref<128x128xbf16, #tpu.memory_space<vmem>>, vector<128x128xbf16>
      tpu.vector_store %arg6[%c0_17, %c0_18], %20 {strides = array<i32>} : memref<128x128xbf16, #tpu.memory_space<vmem>>, vector<128x128xbf16>,
    } else {
    }
    return
  }
  func.func @transform_0(%arg0: i32, %arg1: i32) -> (i32, i32) {
    %c0_i32 = arith.constant 0 : i32
    return %arg0, %arg1 : i32, i32
  }
  func.func @transform_1(%arg0: i32, %arg1: i32) -> (i32, i32) {
    %c0_i32 = arith.constant 0 : i32
    %c0_i32_0 = arith.constant 0 : i32
    return %arg1, %c0_i32 : i32, i32
  }
  func.func @transform_2(%arg0: i32, %arg1: i32) -> (i32, i32) {
    %c0_i32 = arith.constant 0 : i32
    %c0_i32_0 = arith.constant 0 : i32
    %c0_i32_1 = arith.constant 0 : i32
    return %c0_i32, %c0_i32_0 : i32, i32
  }
  func.func @transform_3(%arg0: i32, %arg1: i32) -> (i32, i32) {
    %c0_i32 = arith.constant 0 : i32
    %c0_i32_0 = arith.constant 0 : i32
    %c0_i32_1 = arith.constant 0 : i32
    return %c0_i32, %c0_i32_0 : i32, i32
  }
  func.func @transform_4(%arg0: i32, %arg1: i32) -> (i32, i32) {
    %c0_i32 = arith.constant 0 : i32
    %c0_i32_0 = arith.constant 0 : i32
    return %arg0, %c0_i32 : i32, i32
  }
}

</mosaic_0001>

<llo_original>
// kernel: gcn_model_forward.3
$region0: #{gcn_model_forward.3}
  #allocation0 [shape = 'u32[]', space=smem, size = 0x4, offset = 0x4, fixed_abs, tag = 'smem constant byte address 0x4 - core index']
  #allocation1 [shape = 'u32[144,128]{1,0:T(1,128)}', space=vmem, size = 0x12000, scoped, tag = 'internal scratch']
  #allocation2 [shape = 'f32[128,128]{1,0:T(8,128)}', space=vmem, size = 0x10000, scoped, tag = 'scratch operand']
  %s0 = inlined_call_operand.hbm [shape: bf16[256,256], index: 0, kind: input, shape index: {}]
  %s1 = inlined_call_operand.hbm [shape: bf16[256,128], index: 1, kind: input, shape index: {}]
  %s2 = inlined_call_operand.hbm [shape: f32[128,128], index: 2, kind: input, shape index: {}]
  %s3 = inlined_call_operand.vmem [shape: f32[1,128], index: 3, kind: input, shape index: {}]
  %s4 = inlined_call_operand.vmem [shape: bf16[256,128], index: 4, kind: output, shape index: {}]
  %s5 = sld [smem:[#allocation0]]
  $region69: #{gcn_model_forward.3} parent=0
    _
  %s7 = ssub.s32 1, %s5
  %s8 = scalar_select 0, %s7, %s5
  $region1: #{gcn_model_forward.3} parent=0
    #allocation3 [shape = 'u8[65536]{0}', space=vmem, size = 0x10000, scoped, tag = 'input window, operand 0']
    #allocation4 [shape = 's32[2]{0}', space=sflag, size = 0x8, scoped, tag = 'scoped memory for gcn_model_forward.3']
    #allocation5 [shape = 'u8[65536]{0}', space=vmem, size = 0x10000, scoped, tag = 'input window, operand 1']
    #allocation6 [shape = 's32[2]{0}', space=sflag, size = 0x8, scoped, tag = 'scoped memory for gcn_model_forward.3']
    #allocation7 [shape = 'u8[65536]{0}', space=vmem, size = 0x10000, scoped, tag = 'input window, operand 2, single buffered']
    %9 = vsyncpa [#allocation4], 0
    %s10 = scalar_lea.sflag [#allocation4], 1
    %11 = vsyncpa %s10, 0
    %12 = vsyncpa [#allocation6], 0
    %s13 = scalar_lea.sflag [#allocation6], 1
    %14 = vsyncpa %s13, 0
    loop: start=0, step=1, limit=6
    $region2: #{gcn_model_forward.3} parent=1 // loop_pre_header
      _
    $region3: #{gcn_model_forward.3} parent=1 // loop_header
      %s16 = sphi 0, %s20
      %p17 = scmp.ge.s32.totalorder %s16, 6
      %s23 = sphi 0, %s35
      %s24 = sphi 0, %s31
      %s25 = sphi 0, %s23
      %s26 = sphi 0, %s24
      %s27 = sphi 0, %s25
      %s28 = sphi 0, %s26
      %s40 = sphi 0, %s42
      %s43 = sphi 0, %s40
      %s44 = sphi 0, %s43
      %s60 = sphi 0, %s44
      %s66 = sphi 0, %s68
      %s69 = sphi 0, %s66
      %s70 = sphi 0, %s69
      %s86 = sphi 0, %s70
      %s90 = sphi 0, %s90
      %s92 = sphi 0, %s90
      %s93 = sphi 0, %s92
      %s107 = sphi 0, %s93
      %s111 = sphi 0, %s111
      %s113 = sphi 0, %s111
      %s114 = sphi 0, %s113
      %s128 = sphi 0, %s114
      %s134 = sphi 0, %s136
      %s137 = sphi 0, %s134
      %s138 = sphi 0, %s137
      %s154 = sphi 0, %s138
    $region4: #{gcn_model_forward.3} parent=1 // loop_header_branch
      %19 = sbr.rel (%p17) target = $region8
    $region5: #{gcn_model_forward.3} parent=1 // loop_body
      %s21 = ssub.s32 %s16, 1
      %s22 = ssub.s32 %s16, 2
      %s29 = sadd.s32 1, %s24
      %p30 = scmp.ge.s32.totalorder %s29, 2
      %s31 = scalar_select %p30, 0, %s29
      %s32 = sadd.s32 1, %s23
      %s33 = scalar_select %p30, %s32, %s23
      %p34 = scmp.ge.s32.totalorder %s33, 2
      %s35 = scalar_select %p34, 0, %s33
      %s36 = ssub.s32 %s23, %s35
      %s37 = ssub.s32 %s24, %s31
      %s38 = sor.u32 %s36, %s37
      %p39 = scmp.eq.s32.totalorder %s38, 0
      %s41 = sadd.s32 %s40, 1
      %s42 = scalar_select %p39, %s40, %s41
      %p45 = pneg %p39
      %p46 = scmp.eq.s32.totalorder %s16, 3
      %p47 = por %p45, %p46
      %p48 = scmp.ne.s32.totalorder %s40, %s43
      %p49 = scmp.eq.s32.totalorder %s16, 0
      %p50 = por %p48, %p49
      %p51 = scmp.ne.s32.totalorder %s40, %s43
      %p52 = scmp.eq.s32.totalorder %s21, 3
      %p53 = por %p51, %p52
      %p54 = scmp.ne.s32.totalorder %s43, %s44
      %p55 = scmp.eq.s32.totalorder %s21, 0
      %p56 = por %p54, %p55
      %p57 = scmp.ne.s32.totalorder %s43, %s44
      %p58 = scmp.eq.s32.totalorder %s22, 3
      %p59 = por %p57, %p58
      %p61 = scmp.ne.s32.totalorder %s44, %s60
      %p62 = scmp.eq.s32.totalorder %s22, 0
      %p63 = por %p61, %p62
      %s64 = ssub.s32 %s24, %s31
      %p65 = scmp.eq.s32.totalorder %s64, 0
      %s67 = sadd.s32 %s66, 1
      %s68 = scalar_select %p65, %s66, %s67
      %p71 = pneg %p65
      %p72 = scmp.eq.s32.totalorder %s16, 3
      %p73 = por %p71, %p72
      %p74 = scmp.ne.s32.totalorder %s66, %s69
      %p75 = scmp.eq.s32.totalorder %s16, 0
      %p76 = por %p74, %p75
      %p77 = scmp.ne.s32.totalorder %s66, %s69
      %p78 = scmp.eq.s32.totalorder %s21, 3
      %p79 = por %p77, %p78
      %p80 = scmp.ne.s32.totalorder %s69, %s70
      %p81 = scmp.eq.s32.totalorder %s21, 0
      %p82 = por %p80, %p81
      %p83 = scmp.ne.s32.totalorder %s69, %s70
      %p84 = scmp.eq.s32.totalorder %s22, 3
      %p85 = por %p83, %p84
      %p87 = scmp.ne.s32.totalorder %s70, %s86
      %p88 = scmp.eq.s32.totalorder %s22, 0
      %p89 = por %p87, %p88
      %s91 = sadd.s32 %s90, 1
      %p94 = scmp.eq.s32.totalorder %s16, 3
      %p95 = scmp.ne.s32.totalorder %s90, %s92
      %p96 = scmp.eq.s32.totalorder %s16, 0
      %p97 = por %p95, %p96
      %p98 = scmp.ne.s32.totalorder %s90, %s92
      %p99 = scmp.eq.s32.totalorder %s21, 3
      %p100 = por %p98, %p99
      %p101 = scmp.ne.s32.totalorder %s92, %s93
      %p102 = scmp.eq.s32.totalorder %s21, 0
      %p103 = por %p101, %p102
      %p104 = scmp.ne.s32.totalorder %s92, %s93
      %p105 = scmp.eq.s32.totalorder %s22, 3
      %p106 = por %p104, %p105
      %p108 = scmp.ne.s32.totalorder %s93, %s107
      %p109 = scmp.eq.s32.totalorder %s22, 0
      %p110 = por %p108, %p109
      %s112 = sadd.s32 %s111, 1
      %p115 = scmp.eq.s32.totalorder %s16, 3
      %p116 = scmp.ne.s32.totalorder %s111, %s113
      %p117 = scmp.eq.s32.totalorder %s16, 0
      %p118 = por %p116, %p117
      %p119 = scmp.ne.s32.totalorder %s111, %s113
      %p120 = scmp.eq.s32.totalorder %s21, 3
      %p121 = por %p119, %p120
      %p122 = scmp.ne.s32.totalorder %s113, %s114
      %p123 = scmp.eq.s32.totalorder %s21, 0
      %p124 = por %p122, %p123
      %p125 = scmp.ne.s32.totalorder %s113, %s114
      %p126 = scmp.eq.s32.totalorder %s22, 3
      %p127 = por %p125, %p126
      %p129 = scmp.ne.s32.totalorder %s114, %s128
      %p130 = scmp.eq.s32.totalorder %s22, 0
      %p131 = por %p129, %p130
      %s132 = ssub.s32 %s23, %s35
      %p133 = scmp.eq.s32.totalorder %s132, 0
      %s135 = sadd.s32 %s134, 1
      %s136 = scalar_select %p133, %s134, %s135
      %p139 = pneg %p133
      %p140 = scmp.eq.s32.totalorder %s16, 3
      %p141 = por %p139, %p140
      %p142 = scmp.ne.s32.totalorder %s134, %s137
      %p143 = scmp.eq.s32.totalorder %s16, 0
      %p144 = por %p142, %p143
      %p145 = scmp.ne.s32.totalorder %s134, %s137
      %p146 = scmp.eq.s32.totalorder %s21, 3
      %p147 = por %p145, %p146
      %p148 = scmp.ne.s32.totalorder %s137, %s138
      %p149 = scmp.eq.s32.totalorder %s21, 0
      %p150 = por %p148, %p149
      %p151 = scmp.ne.s32.totalorder %s137, %s138
      %p152 = scmp.eq.s32.totalorder %s22, 3
      %p153 = por %p151, %p152
      %p155 = scmp.ne.s32.totalorder %s138, %s154
      %p156 = scmp.eq.s32.totalorder %s22, 0
      %p157 = por %p155, %p156
      %p158 = scmp.le.s32.totalorder 1, %s16
      %p159 = scmp.lt.s32.totalorder %s16, 5
      %p160 = pnand %p158, %p159
      %p161 = pneg %p160
      // Predicated region
      $region9: #{gcn_model_forward.3} parent=5 // pred_check
        _
      $region10: #{gcn_model_forward.3} parent=5 // pred_check_branch
        %163 = sbr.rel (%p160) target = $region12
      $region11: #{gcn_model_forward.3} parent=5 // pred_region
        %s164 = ssub.s32 %s16, 1
        // Predicated region
        $region13: #{gcn_model_forward.3} parent=11 // pred_check
          %p165 = pneg %p103
        $region14: #{gcn_model_forward.3} parent=11 // pred_check_branch
          %167 = sbr.rel (%p165) target = $region16
        $region15: #{gcn_model_forward.3} parent=11 // pred_region
          %s169 = ssub.s32 2048, 2048
          %170 = vsyncadd [#allocation6], %s169
          %s171 = sshll.u32 [#allocation7], 4
          %s172 = int_to_ptr.vmem [resolvable:$true] %s171
          %177 = dma.hbm_to_vmem [thread:$0]  %s2, 2048, %s172, [#allocation6], 128, 128, 8
        $region16: #{gcn_model_forward.3} parent=11 // pred_fallthru
          _
        // Predicated region
        $region17: #{gcn_model_forward.3} parent=11 // pred_check
          %p178 = pneg %p124
        $region18: #{gcn_model_forward.3} parent=11 // pred_check_branch
          %180 = sbr.rel (%p178) target = $region20
        $region19: #{gcn_model_forward.3} parent=11 // pred_region
          _
        $region20: #{gcn_model_forward.3} parent=11 // pred_fallthru
          _
      $region12: #{gcn_model_forward.3} parent=5 // pred_fallthru
        _
      %p181 = scmp.lt.s32.totalorder %s16, 4
      // Predicated region
      $region21: #{gcn_model_forward.3} parent=5 // pred_check
        %p182 = pneg %p181
      $region22: #{gcn_model_forward.3} parent=5 // pred_check_branch
        %184 = sbr.rel (%p182) target = $region24
      $region23: #{gcn_model_forward.3} parent=5 // pred_region
        // Predicated region
        $region25: #{gcn_model_forward.3} parent=23 // pred_check
          %p185 = pneg %p50
        $region26: #{gcn_model_forward.3} parent=23 // pred_check_branch
          %187 = sbr.rel (%p185) target = $region28
        $region27: #{gcn_model_forward.3} parent=23 // pred_region
          %s188 = sand.u32 %s40, 1
          %s189 = scalar_lea.sflag [#allocation4], %s188
          %s190 = sand.u32 %s40, 1
          %s191 = smul.addr %s190, 64
          %s192 = scalar_lea.vmem [#allocation3], %s191
          %s193 = smul.u32 16, %s23
          %s195 = ssub.s32 1024, 1024
          %196 = vsyncadd %s189, %s195
          %s197 = smul.addr %s193, 2
          %s198 = sadd.s32 %s24, %s197
          %s199 = smul.addr %s198, 64
          %s200 = scalar_lea.hbm %s0, %s199
          %s201 = sshll.u32 %s192, 4
          %s202 = int_to_ptr.vmem [resolvable:$true] %s201
          %207 = dma.hbm_to_vmem [thread:$0]  %s200, 1024, %s202, %s189, 128, 64, 4
        $region28: #{gcn_model_forward.3} parent=23 // pred_fallthru
          _
        // Predicated region
        $region29: #{gcn_model_forward.3} parent=23 // pred_check
          %p208 = pneg %p76
        $region30: #{gcn_model_forward.3} parent=23 // pred_check_branch
          %210 = sbr.rel (%p208) target = $region32
        $region31: #{gcn_model_forward.3} parent=23 // pred_region
          %s211 = sand.u32 %s16, 1
          %s212 = scalar_lea.sflag [#allocation6], %s211
          %s213 = sand.u32 %s66, 1
          %s214 = smul.addr %s213, 64
          %s215 = scalar_lea.vmem [#allocation5], %s214
          %s216 = smul.u32 16, %s24
          %s218 = ssub.s32 1024, 1024
          %219 = vsyncadd %s212, %s218
          %s220 = smul.addr %s216, 64
          %s221 = scalar_lea.hbm %s1, %s220
          %s222 = sshll.u32 %s215, 4
          %s223 = int_to_ptr.vmem [resolvable:$true] %s222
          %228 = dma.hbm_to_vmem [thread:$0]  %s221, 1024, %s223, %s212, 64, 64, 4
        $region32: #{gcn_model_forward.3} parent=23 // pred_fallthru
          _
      $region24: #{gcn_model_forward.3} parent=5 // pred_fallthru
        _
      %p229 = scmp.le.s32.totalorder 1, %s16
      %p230 = scmp.lt.s32.totalorder %s16, 5
      %p231 = pnand %p229, %p230
      %p232 = pneg %p231
      // Predicated region
      $region33: #{gcn_model_forward.3} parent=5 // pred_check
        _
      $region34: #{gcn_model_forward.3} parent=5 // pred_check_branch
        %234 = sbr.rel (%p231) target = $region36
      $region35: #{gcn_model_forward.3} parent=5 // pred_region
        %s235 = ssub.s32 %s16, 1
        %s236 = sand.u32 %s43, 1
        %s237 = scalar_lea.sflag [#allocation4], %s236
        %s238 = sand.u32 %s43, 1
        %s239 = smul.addr %s238, 64
        %s240 = scalar_lea.vmem [#allocation3], %s239
        // Predicated region
        $region37: #{gcn_model_forward.3} parent=35 // pred_check
          %p241 = pneg %p56
        $region38: #{gcn_model_forward.3} parent=35 // pred_check_branch
          %243 = sbr.rel (%p241) target = $region40
        $region39: #{gcn_model_forward.3} parent=35 // pred_region
          %244 = dma.done %s237, 1024
        $region40: #{gcn_model_forward.3} parent=35 // pred_fallthru
          _
        %s245 = sand.u32 %s21, 1
        %s246 = scalar_lea.sflag [#allocation6], %s245
        %s247 = sand.u32 %s69, 1
        %s248 = smul.addr %s247, 64
        %s249 = scalar_lea.vmem [#allocation5], %s248
        // Predicated region
        $region41: #{gcn_model_forward.3} parent=35 // pred_check
          %p250 = pneg %p82
        $region42: #{gcn_model_forward.3} parent=35 // pred_check_branch
          %252 = sbr.rel (%p250) target = $region44
        $region43: #{gcn_model_forward.3} parent=35 // pred_region
          %253 = dma.done %s246, 1024
        $region44: #{gcn_model_forward.3} parent=35 // pred_fallthru
          _
        // Predicated region
        $region45: #{gcn_model_forward.3} parent=35 // pred_check
          %p254 = pneg %p103
        $region46: #{gcn_model_forward.3} parent=35 // pred_check_branch
          %256 = sbr.rel (%p254) target = $region48
        $region47: #{gcn_model_forward.3} parent=35 // pred_region
          %257 = dma.done [#allocation6], 2048
        $region48: #{gcn_model_forward.3} parent=35 // pred_fallthru
          _
        %s258 = sand.u32 %s43, 1
        %s259 = scalar_lea.sflag [#allocation4], %s258
        %s260 = sand.u32 %s43, 1
        %s261 = smul.addr %s260, 64
        %s262 = scalar_lea.vmem [#allocation3], %s261
        %p263 = pneg %p56
        %p264 = pneg %p53
        %s265 = sand.u32 %s21, 1
        %s266 = scalar_lea.sflag [#allocation6], %s265
        %s267 = sand.u32 %s69, 1
        %s268 = smul.addr %s267, 64
        %s269 = scalar_lea.vmem [#allocation5], %s268
        %p270 = pneg %p82
        %p271 = pneg %p79
        %p272 = pneg %p103
        %p273 = pneg %p100
        %p274 = pneg %p124
        %p275 = pneg %p121
        %p276 = pneg %p150
        %p277 = pneg %p147
        %s278 = smul.u32 16, %s25
        %p279 = scmp.lt.s32.totalorder %s278, 31
        %s280 = scalar_select %p279, %s278, 31
        %s281 = smul.addr %s280, 4
        %s282 = scalar_lea.vmem %s4, %s281
        %s283 = smul.u32 16, %s25
        %s284 = smul.u32 16, %s26
        %s285 = smul.u32 16, %s25
        %p286 = scmp.lt.s32.totalorder %s285, 31
        %s287 = scalar_select %p286, %s285, 31
        %s288 = smul.addr %s287, 4
        %s289 = scalar_lea.vmem %s4, %s288
        %s290 = smul.u32 16, %s25
        %p292 = scmp.eq.s32.totalorder %s26, 0
        // Predicated region
        $region49: #{gcn_model_forward.3} parent=35 // pred_check
          %p293 = pneg %p292
        $region50: #{gcn_model_forward.3} parent=35 // pred_check_branch
          %295 = sbr.rel (%p293) target = $region52
        $region51: #{gcn_model_forward.3} parent=35 // pred_region
          %296 = vst [vmem:[#allocation2] sm:$0xff] 0.0
          %297 = vst [vmem:[#allocation2 + $0x8] sm:$0xff] 0.0
          %298 = vst [vmem:[#allocation2 + $0x10] sm:$0xff] 0.0
          %299 = vst [vmem:[#allocation2 + $0x18] sm:$0xff] 0.0
          %300 = vst [vmem:[#allocation2 + $0x20] sm:$0xff] 0.0
          %301 = vst [vmem:[#allocation2 + $0x28] sm:$0xff] 0.0
          %302 = vst [vmem:[#allocation2 + $0x30] sm:$0xff] 0.0
          %303 = vst [vmem:[#allocation2 + $0x38] sm:$0xff] 0.0
          %304 = vst [vmem:[#allocation2 + $0x40] sm:$0xff] 0.0
          %305 = vst [vmem:[#allocation2 + $0x48] sm:$0xff] 0.0
          %306 = vst [vmem:[#allocation2 + $0x50] sm:$0xff] 0.0
          %307 = vst [vmem:[#allocation2 + $0x58] sm:$0xff] 0.0
          %308 = vst [vmem:[#allocation2 + $0x60] sm:$0xff] 0.0
          %309 = vst [vmem:[#allocation2 + $0x68] sm:$0xff] 0.0
          %310 = vst [vmem:[#allocation2 + $0x70] sm:$0xff] 0.0
          %311 = vst [vmem:[#allocation2 + $0x78] sm:$0xff] 0.0
        $region52: #{gcn_model_forward.3} parent=35 // pred_fallthru
          _
        %v312 = vld [vmem:[#allocation2] sm:$0xff]
        %v313 = vld [vmem:[#allocation2 + $0x8] sm:$0xff]
        %v314 = vld [vmem:[#allocation2 + $0x10] sm:$0xff]
        %v315 = vld [vmem:[#allocation2 + $0x18] sm:$0xff]
        %v316 = vld [vmem:[#allocation2 + $0x20] sm:$0xff]
        %v317 = vld [vmem:[#allocation2 + $0x28] sm:$0xff]
        %v318 = vld [vmem:[#allocation2 + $0x30] sm:$0xff]
        %v319 = vld [vmem:[#allocation2 + $0x38] sm:$0xff]
        %v320 = vld [vmem:[#allocation2 + $0x40] sm:$0xff]
        %v321 = vld [vmem:[#allocation2 + $0x48] sm:$0xff]
        %v322 = vld [vmem:[#allocation2 + $0x50] sm:$0xff]
        %v323 = vld [vmem:[#allocation2 + $0x58] sm:$0xff]
        %v324 = vld [vmem:[#allocation2 + $0x60] sm:$0xff]
        %v325 = vld [vmem:[#allocation2 + $0x68] sm:$0xff]
        %v326 = vld [vmem:[#allocation2 + $0x70] sm:$0xff]
        %v327 = vld [vmem:[#allocation2 + $0x78] sm:$0xff]
        %v328 = vld [vmem:[%s240] sm:$0xf]
        %v329 = vld [vmem:[%s240 + $0x4] sm:$0xf]
        %v330 = vld [vmem:[%s240 + $0x8] sm:$0xf]
        %v331 = vld [vmem:[%s240 + $0xc] sm:$0xf]
        %v332 = vld [vmem:[%s240 + $0x10] sm:$0xf]
        %v333 = vld [vmem:[%s240 + $0x14] sm:$0xf]
        %v334 = vld [vmem:[%s240 + $0x18] sm:$0xf]
        %v335 = vld [vmem:[%s240 + $0x1c] sm:$0xf]
        %v336 = vld [vmem:[%s240 + $0x20] sm:$0xf]
        %v337 = vld [vmem:[%s240 + $0x24] sm:$0xf]
        %v338 = vld [vmem:[%s240 + $0x28] sm:$0xf]
        %v339 = vld [vmem:[%s240 + $0x2c] sm:$0xf]
        %v340 = vld [vmem:[%s240 + $0x30] sm:$0xf]
        %v341 = vld [vmem:[%s240 + $0x34] sm:$0xf]
        %v342 = vld [vmem:[%s240 + $0x38] sm:$0xf]
        %v343 = vld [vmem:[%s240 + $0x3c] sm:$0xf]
        %v344 = vld [vmem:[%s249] sm:$0xf]
        %v345 = vld [vmem:[%s249 + $0x4] sm:$0xf]
        %v346 = vld [vmem:[%s249 + $0x8] sm:$0xf]
        %v347 = vld [vmem:[%s249 + $0xc] sm:$0xf]
        %v348 = vld [vmem:[%s249 + $0x10] sm:$0xf]
        %v349 = vld [vmem:[%s249 + $0x14] sm:$0xf]
        %v350 = vld [vmem:[%s249 + $0x18] sm:$0xf]
        %v351 = vld [vmem:[%s249 + $0x1c] sm:$0xf]
        %v352 = vld [vmem:[%s249 + $0x20] sm:$0xf]
        %v353 = vld [vmem:[%s249 + $0x24] sm:$0xf]
        %v354 = vld [vmem:[%s249 + $0x28] sm:$0xf]
        %v355 = vld [vmem:[%s249 + $0x2c] sm:$0xf]
        %v356 = vld [vmem:[%s249 + $0x30] sm:$0xf]
        %v357 = vld [vmem:[%s249 + $0x34] sm:$0xf]
        %v358 = vld [vmem:[%s249 + $0x38] sm:$0xf]
        %v359 = vld [vmem:[%s249 + $0x3c] sm:$0xf]
        %v376 = vunpack.c.l.b16 %v328
        %v377 = vunpack.c.l.b16 %v329
        %v378 = vunpack.c.l.b16 %v330
        %v379 = vunpack.c.l.b16 %v331
        %v380 = vunpack.c.l.b16 %v332
        %v381 = vunpack.c.l.b16 %v333
        %v382 = vunpack.c.l.b16 %v334
        %v383 = vunpack.c.l.b16 %v335
        %v384 = vunpack.c.l.b16 %v336
        %v385 = vunpack.c.l.b16 %v337
        %v386 = vunpack.c.l.b16 %v338
        %v387 = vunpack.c.l.b16 %v339
        %v388 = vunpack.c.l.b16 %v340
        %v389 = vunpack.c.l.b16 %v341
        %v390 = vunpack.c.l.b16 %v342
        %v391 = vunpack.c.l.b16 %v343
        %v392 = vpack.c.b16 %v377, %v376
        %v393 = vpack.c.b16 %v379, %v378
        %v394 = vpack.c.b16 %v381, %v380
        %v395 = vpack.c.b16 %v383, %v382
        %v396 = vpack.c.b16 %v385, %v384
        %v397 = vpack.c.b16 %v387, %v386
        %v398 = vpack.c.b16 %v389, %v388
        %v399 = vpack.c.b16 %v391, %v390
        %v424 = vunpack.c.l.b16 %v344
        %v425 = vunpack.c.l.b16 %v345
        %v426 = vunpack.c.l.b16 %v346
        %v427 = vunpack.c.l.b16 %v347
        %v428 = vunpack.c.l.b16 %v348
        %v429 = vunpack.c.l.b16 %v349
        %v430 = vunpack.c.l.b16 %v350
        %v431 = vunpack.c.l.b16 %v351
        %v432 = vunpack.c.l.b16 %v352
        %v433 = vunpack.c.l.b16 %v353
        %v434 = vunpack.c.l.b16 %v354
        %v435 = vunpack.c.l.b16 %v355
        %v436 = vunpack.c.l.b16 %v356
        %v437 = vunpack.c.l.b16 %v357
        %v438 = vunpack.c.l.b16 %v358
        %v439 = vunpack.c.l.b16 %v359
        %v440 = vpack.c.b16 %v425, %v424
        %v441 = vpack.c.b16 %v427, %v426
        %v442 = vpack.c.b16 %v429, %v428
        %v443 = vpack.c.b16 %v431, %v430
        %v444 = vpack.c.b16 %v433, %v432
        %v445 = vpack.c.b16 %v435, %v434
        %v446 = vpack.c.b16 %v437, %v436
        %v447 = vpack.c.b16 %v439, %v438
        %456 = vmatprep.subr.bf16.mxu0 0
        %457 = vmatpush1.bf16.msra.mxu0 %v447
        %458 = vmatprep.subr.bf16.mxu0 0
        %459 = vmatpush1.bf16.msra.mxu0 %v446
        %460 = vmatprep.subr.bf16.mxu0 0
        %461 = vmatpush1.bf16.msra.mxu0 %v445
        %462 = vmatprep.subr.bf16.mxu0 0
        %463 = vmatpush1.bf16.msra.mxu0 %v444
        %464 = vmatprep.subr.bf16.mxu0 0
        %465 = vmatpush1.bf16.msra.mxu0 %v443
        %466 = vmatprep.subr.bf16.mxu0 0
        %467 = vmatpush1.bf16.msra.mxu0 %v442
        %468 = vmatprep.subr.bf16.mxu0 0
        %469 = vmatpush1.bf16.msra.mxu0 %v441
        %470 = vmatprep.subr.bf16.mxu0 0
        %471 = vmatpush1.bf16.msra.mxu0 %v440
        %472 = vmatprep.subr.bf16.mxu0 0
        %473 = vmatpush2.bf16.msra.mxu0 0
        %474 = vmatprep.subr.bf16.mxu0 0
        %475 = vmatpush2.bf16.msra.mxu0 0
        %476 = vmatprep.subr.bf16.mxu0 0
        %477 = vmatpush2.bf16.msra.mxu0 0
        %478 = vmatprep.subr.bf16.mxu0 0
        %479 = vmatpush2.bf16.msra.mxu0 0
        %480 = vmatprep.subr.bf16.mxu0 0
        %481 = vmatpush2.bf16.msra.mxu0 0
        %482 = vmatprep.subr.bf16.mxu0 0
        %483 = vmatpush2.bf16.msra.mxu0 0
        %484 = vmatprep.subr.bf16.mxu0 0
        %485 = vmatpush2.bf16.msra.mxu0 0
        %486 = vmatprep.subr.bf16.mxu0 0
        %487 = vmatpush2.bf16.msra.mxu0 0
        %488 = vmatprep.mubr.bf16.mxu0 0
        %489 = vmatmul.mubr.bf16.gmra.mxu0 %v392
        %v490 = vpop.f32.mrf.mxu0
        %v491 = vadd.f32 0.0, %v490
        %v492 = vpop.f32.mrf.mxu0
        %v493 = vpop.f32.mrf.mxu0
        %v494 = vadd.f32 0.0, %v493
        %v495 = vpop.f32.mrf.mxu0
        %496 = vmatprep.mubr.bf16.mxu0 0
        %497 = vmatmul.mubr.bf16.gmra.mxu0 %v393
        %v498 = vpop.f32.mrf.mxu0
        %v499 = vadd.f32 0.0, %v498
        %v500 = vpop.f32.mrf.mxu0
        %v501 = vpop.f32.mrf.mxu0
        %v502 = vadd.f32 0.0, %v501
        %v503 = vpop.f32.mrf.mxu0
        %504 = vmatprep.mubr.bf16.mxu0 0
        %505 = vmatmul.mubr.bf16.gmra.mxu0 %v394
        %v506 = vpop.f32.mrf.mxu0
        %v507 = vadd.f32 0.0, %v506
        %v508 = vpop.f32.mrf.mxu0
        %v509 = vpop.f32.mrf.mxu0
        %v510 = vadd.f32 0.0, %v509
        %v511 = vpop.f32.mrf.mxu0
        %512 = vmatprep.mubr.bf16.mxu0 0
        %513 = vmatmul.mubr.bf16.gmra.mxu0 %v395
        %v514 = vpop.f32.mrf.mxu0
        %v515 = vadd.f32 0.0, %v514
        %v516 = vpop.f32.mrf.mxu0
        %v517 = vpop.f32.mrf.mxu0
        %v518 = vadd.f32 0.0, %v517
        %v519 = vpop.f32.mrf.mxu0
        %520 = vmatprep.mubr.bf16.mxu0 0
        %521 = vmatmul.mubr.bf16.gmra.mxu0 %v396
        %v522 = vpop.f32.mrf.mxu0
        %v523 = vadd.f32 0.0, %v522
        %v524 = vpop.f32.mrf.mxu0
        %v525 = vpop.f32.mrf.mxu0
        %v526 = vadd.f32 0.0, %v525
        %v527 = vpop.f32.mrf.mxu0
        %528 = vmatprep.mubr.bf16.mxu0 0
        %529 = vmatmul.mubr.bf16.gmra.mxu0 %v397
        %v530 = vpop.f32.mrf.mxu0
        %v531 = vadd.f32 0.0, %v530
        %v532 = vpop.f32.mrf.mxu0
        %v533 = vpop.f32.mrf.mxu0
        %v534 = vadd.f32 0.0, %v533
        %v535 = vpop.f32.mrf.mxu0
        %536 = vmatprep.mubr.bf16.mxu0 0
        %537 = vmatmul.mubr.bf16.gmra.mxu0 %v398
        %v538 = vpop.f32.mrf.mxu0
        %v539 = vadd.f32 0.0, %v538
        %v540 = vpop.f32.mrf.mxu0
        %v541 = vpop.f32.mrf.mxu0
        %v542 = vadd.f32 0.0, %v541
        %v543 = vpop.f32.mrf.mxu0
        %544 = vmatprep.mubr.bf16.mxu0 0
        %545 = vmatmul.mubr.bf16.gmra.mxu0 %v399
        %v546 = vpop.f32.mrf.mxu0
        %v547 = vadd.f32 0.0, %v546
        %v548 = vpop.f32.mrf.mxu0
        %v549 = vpop.f32.mrf.mxu0
        %v550 = vadd.f32 0.0, %v549
        %v551 = vpop.f32.mrf.mxu0
        %552 = vdwg.mxu0
        %v553 = vadd.f32 %v312, %v491
        %v554 = vadd.f32 %v313, %v494
        %v555 = vadd.f32 %v314, %v499
        %v556 = vadd.f32 %v315, %v502
        %v557 = vadd.f32 %v316, %v507
        %v558 = vadd.f32 %v317, %v510
        %v559 = vadd.f32 %v318, %v515
        %v560 = vadd.f32 %v319, %v518
        %v561 = vadd.f32 %v320, %v523
        %v562 = vadd.f32 %v321, %v526
        %v563 = vadd.f32 %v322, %v531
        %v564 = vadd.f32 %v323, %v534
        %v565 = vadd.f32 %v324, %v539
        %v566 = vadd.f32 %v325, %v542
        %v567 = vadd.f32 %v326, %v547
        %v568 = vadd.f32 %v327, %v550
        %569 = vst [vmem:[#allocation2] sm:$0xff] %v553
        %570 = vst [vmem:[#allocation2 + $0x8] sm:$0xff] %v554
        %571 = vst [vmem:[#allocation2 + $0x10] sm:$0xff] %v555
        %572 = vst [vmem:[#allocation2 + $0x18] sm:$0xff] %v556
        %573 = vst [vmem:[#allocation2 + $0x20] sm:$0xff] %v557
        %574 = vst [vmem:[#allocation2 + $0x28] sm:$0xff] %v558
        %575 = vst [vmem:[#allocation2 + $0x30] sm:$0xff] %v559
        %576 = vst [vmem:[#allocation2 + $0x38] sm:$0xff] %v560
        %577 = vst [vmem:[#allocation2 + $0x40] sm:$0xff] %v561
        %578 = vst [vmem:[#allocation2 + $0x48] sm:$0xff] %v562
        %579 = vst [vmem:[#allocation2 + $0x50] sm:$0xff] %v563
        %580 = vst [vmem:[#allocation2 + $0x58] sm:$0xff] %v564
        %581 = vst [vmem:[#allocation2 + $0x60] sm:$0xff] %v565
        %582 = vst [vmem:[#allocation2 + $0x68] sm:$0xff] %v566
        %583 = vst [vmem:[#allocation2 + $0x70] sm:$0xff] %v567
        %584 = vst [vmem:[#allocation2 + $0x78] sm:$0xff] %v568
        %p585 = scmp.eq.s32.totalorder %s26, 1
        // Predicated region
        $region53: #{gcn_model_forward.3} parent=35 // pred_check
          %p586 = pneg %p585
        $region54: #{gcn_model_forward.3} parent=35 // pred_check_branch
          %588 = sbr.rel (%p586) target = $region56
        $region55: #{gcn_model_forward.3} parent=35 // pred_region
          %v589 = vld [vmem:[#allocation2] sm:$0xff]
          %v590 = vld [vmem:[#allocation2 + $0x8] sm:$0xff]
          %v591 = vld [vmem:[#allocation2 + $0x10] sm:$0xff]
          %v592 = vld [vmem:[#allocation2 + $0x18] sm:$0xff]
          %v593 = vld [vmem:[#allocation2 + $0x20] sm:$0xff]
          %v594 = vld [vmem:[#allocation2 + $0x28] sm:$0xff]
          %v595 = vld [vmem:[#allocation2 + $0x30] sm:$0xff]
          %v596 = vld [vmem:[#allocation2 + $0x38] sm:$0xff]
          %v597 = vld [vmem:[#allocation2 + $0x40] sm:$0xff]
          %v598 = vld [vmem:[#allocation2 + $0x48] sm:$0xff]
          %v599 = vld [vmem:[#allocation2 + $0x50] sm:$0xff]
          %v600 = vld [vmem:[#allocation2 + $0x58] sm:$0xff]
          %v601 = vld [vmem:[#allocation2 + $0x60] sm:$0xff]
          %v602 = vld [vmem:[#allocation2 + $0x68] sm:$0xff]
          %v603 = vld [vmem:[#allocation2 + $0x70] sm:$0xff]
          %v604 = vld [vmem:[#allocation2 + $0x78] sm:$0xff]
          %v605 = vld [vmem:[#allocation7] sm:$0xff]
          %v606 = vld [vmem:[#allocation7 + $0x8] sm:$0xff]
          %v607 = vld [vmem:[#allocation7 + $0x10] sm:$0xff]
          %v608 = vld [vmem:[#allocation7 + $0x18] sm:$0xff]
          %v609 = vld [vmem:[#allocation7 + $0x20] sm:$0xff]
          %v610 = vld [vmem:[#allocation7 + $0x28] sm:$0xff]
          %v611 = vld [vmem:[#allocation7 + $0x30] sm:$0xff]
          %v612 = vld [vmem:[#allocation7 + $0x38] sm:$0xff]
          %v613 = vld [vmem:[#allocation7 + $0x40] sm:$0xff]
          %v614 = vld [vmem:[#allocation7 + $0x48] sm:$0xff]
          %v615 = vld [vmem:[#allocation7 + $0x50] sm:$0xff]
          %v616 = vld [vmem:[#allocation7 + $0x58] sm:$0xff]
          %v617 = vld [vmem:[#allocation7 + $0x60] sm:$0xff]
          %v618 = vld [vmem:[#allocation7 + $0x68] sm:$0xff]
          %v619 = vld [vmem:[#allocation7 + $0x70] sm:$0xff]
          %v620 = vld [vmem:[#allocation7 + $0x78] sm:$0xff]
          %v621 = vld [vmem:[%s3] sm:$0x1]
          %v623 = vlaneseq
          %v624 = vshrl.u32 %v623, 7
          %v625 = vsub.s32 0, %v624
          %v626 = vrot.slane %v621, %v625
          %628 = vmatprep.subr.mxu0 0.0
          %629 = vmatpush1.msra.mxu0 %v620
          %630 = vmatprep.subr.mxu0 0.0
          %631 = vmatpush1.msra.mxu0 %v619
          %632 = vmatprep.subr.mxu0 0.0
          %633 = vmatpush1.msra.mxu0 %v618
          %634 = vmatprep.subr.mxu0 0.0
          %635 = vmatpush1.msra.mxu0 %v617
          %636 = vmatprep.subr.mxu0 0.0
          %637 = vmatpush1.msra.mxu0 %v616
          %638 = vmatprep.subr.mxu0 0.0
          %639 = vmatpush1.msra.mxu0 %v615
          %640 = vmatprep.subr.mxu0 0.0
          %641 = vmatpush1.msra.mxu0 %v614
          %642 = vmatprep.subr.mxu0 0.0
          %643 = vmatpush1.msra.mxu0 %v613
          %644 = vmatprep.subr.mxu0 0.0
          %645 = vmatpush1.msra.mxu0 %v612
          %646 = vmatprep.subr.mxu0 0.0
          %647 = vmatpush1.msra.mxu0 %v611
          %648 = vmatprep.subr.mxu0 0.0
          %649 = vmatpush1.msra.mxu0 %v610
          %650 = vmatprep.subr.mxu0 0.0
          %651 = vmatpush1.msra.mxu0 %v609
          %652 = vmatprep.subr.mxu0 0.0
          %653 = vmatpush1.msra.mxu0 %v608
          %654 = vmatprep.subr.mxu0 0.0
          %655 = vmatpush1.msra.mxu0 %v607
          %656 = vmatprep.subr.mxu0 0.0
          %657 = vmatpush1.msra.mxu0 %v606
          %658 = vmatprep.subr.mxu0 0.0
          %659 = vmatpush1.msra.mxu0 %v605
          %660 = vmatprep.subr.mxu0 0.0
          %661 = vmatpush2.msra.mxu0 0.0
          %662 = vmatprep.subr.mxu0 0.0
          %663 = vmatpush2.msra.mxu0 0.0
          %664 = vmatprep.subr.mxu0 0.0
          %665 = vmatpush2.msra.mxu0 0.0
          %666 = vmatprep.subr.mxu0 0.0
          %667 = vmatpush2.msra.mxu0 0.0
          %668 = vmatprep.subr.mxu0 0.0
          %669 = vmatpush2.msra.mxu0 0.0
          %670 = vmatprep.subr.mxu0 0.0
          %671 = vmatpush2.msra.mxu0 0.0
          %672 = vmatprep.subr.mxu0 0.0
          %673 = vmatpush2.msra.mxu0 0.0
          %674 = vmatprep.subr.mxu0 0.0
          %675 = vmatpush2.msra.mxu0 0.0
          %676 = vmatprep.subr.mxu0 0.0
          %677 = vmatpush2.msra.mxu0 0.0
          %678 = vmatprep.subr.mxu0 0.0
          %679 = vmatpush2.msra.mxu0 0.0
          %680 = vmatprep.subr.mxu0 0.0
          %681 = vmatpush2.msra.mxu0 0.0
          %682 = vmatprep.subr.mxu0 0.0
          %683 = vmatpush2.msra.mxu0 0.0
          %684 = vmatprep.subr.mxu0 0.0
          %685 = vmatpush2.msra.mxu0 0.0
          %686 = vmatprep.subr.mxu0 0.0
          %687 = vmatpush2.msra.mxu0 0.0
          %688 = vmatprep.subr.mxu0 0.0
          %689 = vmatpush2.msra.mxu0 0.0
          %690 = vmatprep.subr.mxu0 0.0
          %691 = vmatpush2.msra.mxu0 0.0
          %692 = vmatprep.mubr.f32.mxu0 0.0
          %693 = vmatmul.mubr.f32.gmra.mxu0 %v589
          %v694 = vpop.f32.mrf.mxu0
          %v695 = vadd.f32 %v626, %v694
          %v696 = vpop.f32.mrf.mxu0
          %697 = vmatprep.mubr.f32.mxu0 0.0
          %698 = vmatmul.mubr.f32.gmra.mxu0 %v590
          %v699 = vpop.f32.mrf.mxu0
          %v700 = vadd.f32 %v626, %v699
          %v701 = vpop.f32.mrf.mxu0
          %702 = vmatprep.mubr.f32.mxu0 0.0
          %703 = vmatmul.mubr.f32.gmra.mxu0 %v591
          %v704 = vpop.f32.mrf.mxu0
          %v705 = vadd.f32 %v626, %v704
          %v706 = vpop.f32.mrf.mxu0
          %707 = vmatprep.mubr.f32.mxu0 0.0
          %708 = vmatmul.mubr.f32.gmra.mxu0 %v592
          %v709 = vpop.f32.mrf.mxu0
          %v710 = vadd.f32 %v626, %v709
          %v711 = vpop.f32.mrf.mxu0
          %712 = vmatprep.mubr.f32.mxu0 0.0
          %713 = vmatmul.mubr.f32.gmra.mxu0 %v593
          %v714 = vpop.f32.mrf.mxu0
          %v715 = vadd.f32 %v626, %v714
          %v716 = vpop.f32.mrf.mxu0
          %717 = vmatprep.mubr.f32.mxu0 0.0
          %718 = vmatmul.mubr.f32.gmra.mxu0 %v594
          %v719 = vpop.f32.mrf.mxu0
          %v720 = vadd.f32 %v626, %v719
          %v721 = vpop.f32.mrf.mxu0
          %722 = vmatprep.mubr.f32.mxu0 0.0
          %723 = vmatmul.mubr.f32.gmra.mxu0 %v595
          %v724 = vpop.f32.mrf.mxu0
          %v725 = vadd.f32 %v626, %v724
          %v726 = vpop.f32.mrf.mxu0
          %727 = vmatprep.mubr.f32.mxu0 0.0
          %728 = vmatmul.mubr.f32.gmra.mxu0 %v596
          %v729 = vpop.f32.mrf.mxu0
          %v730 = vadd.f32 %v626, %v729
          %v731 = vpop.f32.mrf.mxu0
          %732 = vmatprep.mubr.f32.mxu0 0.0
          %733 = vmatmul.mubr.f32.gmra.mxu0 %v597
          %v734 = vpop.f32.mrf.mxu0
          %v735 = vadd.f32 %v626, %v734
          %v736 = vpop.f32.mrf.mxu0
          %737 = vmatprep.mubr.f32.mxu0 0.0
          %738 = vmatmul.mubr.f32.gmra.mxu0 %v598
          %v739 = vpop.f32.mrf.mxu0
          %v740 = vadd.f32 %v626, %v739
          %v741 = vpop.f32.mrf.mxu0
          %742 = vmatprep.mubr.f32.mxu0 0.0
          %743 = vmatmul.mubr.f32.gmra.mxu0 %v599
          %v744 = vpop.f32.mrf.mxu0
          %v745 = vadd.f32 %v626, %v744
          %v746 = vpop.f32.mrf.mxu0
          %747 = vmatprep.mubr.f32.mxu0 0.0
          %748 = vmatmul.mubr.f32.gmra.mxu0 %v600
          %v749 = vpop.f32.mrf.mxu0
          %v750 = vadd.f32 %v626, %v749
          %v751 = vpop.f32.mrf.mxu0
          %752 = vmatprep.mubr.f32.mxu0 0.0
          %753 = vmatmul.mubr.f32.gmra.mxu0 %v601
          %v754 = vpop.f32.mrf.mxu0
          %v755 = vadd.f32 %v626, %v754
          %v756 = vpop.f32.mrf.mxu0
          %757 = vmatprep.mubr.f32.mxu0 0.0
          %758 = vmatmul.mubr.f32.gmra.mxu0 %v602
          %v759 = vpop.f32.mrf.mxu0
          %v760 = vadd.f32 %v626, %v759
          %v761 = vpop.f32.mrf.mxu0
          %762 = vmatprep.mubr.f32.mxu0 0.0
          %763 = vmatmul.mubr.f32.gmra.mxu0 %v603
          %v764 = vpop.f32.mrf.mxu0
          %v765 = vadd.f32 %v626, %v764
          %v766 = vpop.f32.mrf.mxu0
          %767 = vmatprep.mubr.f32.mxu0 0.0
          %768 = vmatmul.mubr.f32.gmra.mxu0 %v604
          %v769 = vpop.f32.mrf.mxu0
          %v770 = vadd.f32 %v626, %v769
          %v771 = vpop.f32.mrf.mxu0
          %772 = vdwg.mxu0
          %v773 = vmax.f32 %v695, 0.0
          %v774 = vmax.f32 %v700, 0.0
          %v775 = vmax.f32 %v705, 0.0
          %v776 = vmax.f32 %v710, 0.0
          %v777 = vmax.f32 %v715, 0.0
          %v778 = vmax.f32 %v720, 0.0
          %v779 = vmax.f32 %v725, 0.0
          %v780 = vmax.f32 %v730, 0.0
          %v781 = vmax.f32 %v735, 0.0
          %v782 = vmax.f32 %v740, 0.0
          %v783 = vmax.f32 %v745, 0.0
          %v784 = vmax.f32 %v750, 0.0
          %v785 = vmax.f32 %v755, 0.0
          %v786 = vmax.f32 %v760, 0.0
          %v787 = vmax.f32 %v765, 0.0
          %v788 = vmax.f32 %v770, 0.0
          %v789 = vpack.c.bf16 %v774, %v773
          %v790 = vpack.c.bf16 %v776, %v775
          %v791 = vpack.c.bf16 %v778, %v777
          %v792 = vpack.c.bf16 %v780, %v779
          %v793 = vpack.c.bf16 %v782, %v781
          %v794 = vpack.c.bf16 %v784, %v783
          %v795 = vpack.c.bf16 %v786, %v785
          %v796 = vpack.c.bf16 %v788, %v787
          %v805 = vunpack.c.l.b16 %v789
          %v806 = vunpack.c.h.b16 %v789
          %v807 = vunpack.c.l.b16 %v790
          %v808 = vunpack.c.h.b16 %v790
          %v809 = vunpack.c.l.b16 %v791
          %v810 = vunpack.c.h.b16 %v791
          %v811 = vunpack.c.l.b16 %v792
          %v812 = vunpack.c.h.b16 %v792
          %v813 = vunpack.c.l.b16 %v793
          %v814 = vunpack.c.h.b16 %v793
          %v815 = vunpack.c.l.b16 %v794
          %v816 = vunpack.c.h.b16 %v794
          %v817 = vunpack.c.l.b16 %v795
          %v818 = vunpack.c.h.b16 %v795
          %v819 = vunpack.c.l.b16 %v796
          %v820 = vunpack.c.h.b16 %v796
          %v821 = vpack.c.b16 %v805, %v805
          %v822 = vpack.c.b16 %v806, %v806
          %v823 = vpack.c.b16 %v807, %v807
          %v824 = vpack.c.b16 %v808, %v808
          %v825 = vpack.c.b16 %v809, %v809
          %v826 = vpack.c.b16 %v810, %v810
          %v827 = vpack.c.b16 %v811, %v811
          %v828 = vpack.c.b16 %v812, %v812
          %v829 = vpack.c.b16 %v813, %v813
          %v830 = vpack.c.b16 %v814, %v814
          %v831 = vpack.c.b16 %v815, %v815
          %v832 = vpack.c.b16 %v816, %v816
          %v833 = vpack.c.b16 %v817, %v817
          %v834 = vpack.c.b16 %v818, %v818
          %v835 = vpack.c.b16 %v819, %v819
          %v836 = vpack.c.b16 %v820, %v820
          %853 = vst [vmem:[%s289] sm:$0xf] %v821
          %854 = vst [vmem:[%s289 + $0x4] sm:$0xf] %v822
          %855 = vst [vmem:[%s289 + $0x8] sm:$0xf] %v823
          %856 = vst [vmem:[%s289 + $0xc] sm:$0xf] %v824
          %857 = vst [vmem:[%s289 + $0x10] sm:$0xf] %v825
          %858 = vst [vmem:[%s289 + $0x14] sm:$0xf] %v826
          %859 = vst [vmem:[%s289 + $0x18] sm:$0xf] %v827
          %860 = vst [vmem:[%s289 + $0x1c] sm:$0xf] %v828
          %861 = vst [vmem:[%s289 + $0x20] sm:$0xf] %v829
          %862 = vst [vmem:[%s289 + $0x24] sm:$0xf] %v830
          %863 = vst [vmem:[%s289 + $0x28] sm:$0xf] %v831
          %864 = vst [vmem:[%s289 + $0x2c] sm:$0xf] %v832
          %865 = vst [vmem:[%s289 + $0x30] sm:$0xf] %v833
          %866 = vst [vmem:[%s289 + $0x34] sm:$0xf] %v834
          %867 = vst [vmem:[%s289 + $0x38] sm:$0xf] %v835
          %868 = vst [vmem:[%s289 + $0x3c] sm:$0xf] %v836
        $region56: #{gcn_model_forward.3} parent=35 // pred_fallthru
          _
        %s869 = smul.u32 16, %s25
        %p870 = scmp.lt.s32.totalorder %s869, 31
        %s871 = scalar_select %p870, %s869, 31
        %s872 = smul.addr %s871, 4
        %s873 = scalar_lea.vmem %s4, %s872
        // Predicated region
        $region57: #{gcn_model_forward.3} parent=35 // pred_check
          %p874 = pneg %p147
        $region58: #{gcn_model_forward.3} parent=35 // pred_check_branch
          %876 = sbr.rel (%p874) target = $region60
        $region59: #{gcn_model_forward.3} parent=35 // pred_region
          %s877 = smul.u32 16, %s25
        $region60: #{gcn_model_forward.3} parent=35 // pred_fallthru
          _
      $region36: #{gcn_model_forward.3} parent=5 // pred_fallthru
        _
      %p878 = scmp.le.s32.totalorder 2, %s16
      // Predicated region
      $region61: #{gcn_model_forward.3} parent=5 // pred_check
        %p879 = pneg %p878
      $region62: #{gcn_model_forward.3} parent=5 // pred_check_branch
        %881 = sbr.rel (%p879) target = $region64
      $region63: #{gcn_model_forward.3} parent=5 // pred_region
        %s882 = ssub.s32 %s16, 2
        // Predicated region
        $region65: #{gcn_model_forward.3} parent=63 // pred_check
          %p883 = pneg %p153
        $region66: #{gcn_model_forward.3} parent=63 // pred_check_branch
          %885 = sbr.rel (%p883) target = $region68
        $region67: #{gcn_model_forward.3} parent=63 // pred_region
          %s886 = smul.u32 16, %s27
          %p887 = scmp.lt.s32.totalorder %s886, 31
          %s888 = scalar_select %p887, %s886, 31
          %s889 = smul.addr %s888, 4
          %s890 = scalar_lea.vmem %s4, %s889
        $region68: #{gcn_model_forward.3} parent=63 // pred_fallthru
          _
      $region64: #{gcn_model_forward.3} parent=5 // pred_fallthru
        _
    $region6: #{gcn_model_forward.3} parent=1 // loop_footer
      %s20 = sadd.s32 1, %s16
    $region7: #{gcn_model_forward.3} parent=1 // loop_footer_branch
      %15 = sbr.rel target = $region3
    $region8: #{gcn_model_forward.3} parent=1 // loop_exit
      _
    %891 = vsyncpa [#allocation4], 1
    %s892 = scalar_lea.sflag [#allocation4], 1
    %893 = vsyncpa %s892, 1
    %894 = vsyncpa [#allocation6], 1
    %s895 = scalar_lea.sflag [#allocation6], 1
    %896 = vsyncpa %s895, 1

// kernel: gcn_model_forward.5
$region0: #{gcn_model_forward.5}
  #allocation0 [shape = 'u32[]', space=smem, size = 0x4, offset = 0x4, fixed_abs, tag = 'smem constant byte address 0x4 - core index']
  #allocation1 [shape = 'u32[144,128]{1,0:T(1,128)}', space=vmem, size = 0x12000, scoped, tag = 'internal scratch']
  #allocation2 [shape = 'f32[4,128]{1,0:T(4,128)}', space=vmem, size = 0x800, scoped, tag = 'scratch operand']
  %s0 = inlined_call_operand.vmem [shape: f32[4,256], index: 0, kind: input, shape index: {}]
  %s1 = inlined_call_operand.vmem [shape: bf16[256,128], index: 1, kind: input, shape index: {}]
  %s2 = inlined_call_operand.vmem [shape: f32[128,128], index: 2, kind: input, shape index: {}]
  %s3 = inlined_call_operand.vmem [shape: f32[1,128], index: 3, kind: input, shape index: {}]
  %s4 = inlined_call_operand.hbm [shape: f32[4,128], index: 4, kind: output, shape index: {}]
  %s5 = sld [smem:[#allocation0]]
  $region57: #{gcn_model_forward.5} parent=0
    _
  %s7 = ssub.s32 1, %s5
  %s8 = scalar_select 0, %s7, %s5
  $region1: #{gcn_model_forward.5} parent=0
    #allocation3 [shape = 'u8[2048]{0}', space=vmem, size = 0x800, scoped, tag = 'output window, operand 0, single buffered']
    #allocation4 [shape = 's32[2]{0}', space=sflag, size = 0x8, scoped, tag = 'scoped memory for gcn_model_forward.5']
    %9 = vsyncpa [#allocation4], 0
    loop: start=0, step=1, limit=4
    $region2: #{gcn_model_forward.5} parent=1 // loop_pre_header
      _
    $region3: #{gcn_model_forward.5} parent=1 // loop_header
      %s11 = sphi 0, %s15
      %p12 = scmp.ge.s32.totalorder %s11, 4
      %s21 = sphi 0, %s23
      %s24 = sphi 0, %s21
      %s25 = sphi 0, %s24
      %s41 = sphi 0, %s25
      %s47 = sphi 0, %s49
      %s50 = sphi 0, %s47
      %s51 = sphi 0, %s50
      %s67 = sphi 0, %s51
      %s71 = sphi 0, %s71
      %s73 = sphi 0, %s71
      %s74 = sphi 0, %s73
      %s88 = sphi 0, %s74
      %s92 = sphi 0, %s92
      %s94 = sphi 0, %s92
      %s95 = sphi 0, %s94
      %s109 = sphi 0, %s95
      %s113 = sphi 0, %s113
      %s115 = sphi 0, %s113
      %s116 = sphi 0, %s115
      %s130 = sphi 0, %s116
    $region4: #{gcn_model_forward.5} parent=1 // loop_header_branch
      %14 = sbr.rel (%p12) target = $region8
    $region5: #{gcn_model_forward.5} parent=1 // loop_body
      %s16 = ssub.s32 %s11, 1
      %s17 = ssub.s32 %s11, 2
      %s18 = sadd.s32 %s11, 1
      %s19 = ssub.s32 %s11, %s18
      %p20 = scmp.eq.s32.totalorder %s19, 0
      %s22 = sadd.s32 %s21, 1
      %s23 = scalar_select %p20, %s21, %s22
      %p26 = pneg %p20
      %p27 = scmp.eq.s32.totalorder %s11, 1
      %p28 = por %p26, %p27
      %p29 = scmp.ne.s32.totalorder %s21, %s24
      %p30 = scmp.eq.s32.totalorder %s11, 0
      %p31 = por %p29, %p30
      %p32 = scmp.ne.s32.totalorder %s21, %s24
      %p33 = scmp.eq.s32.totalorder %s16, 1
      %p34 = por %p32, %p33
      %p35 = scmp.ne.s32.totalorder %s24, %s25
      %p36 = scmp.eq.s32.totalorder %s16, 0
      %p37 = por %p35, %p36
      %p38 = scmp.ne.s32.totalorder %s24, %s25
      %p39 = scmp.eq.s32.totalorder %s17, 1
      %p40 = por %p38, %p39
      %p42 = scmp.ne.s32.totalorder %s25, %s41
      %p43 = scmp.eq.s32.totalorder %s17, 0
      %p44 = por %p42, %p43
      %s45 = ssub.s32 %s11, %s18
      %p46 = scmp.eq.s32.totalorder %s45, 0
      %s48 = sadd.s32 %s47, 1
      %s49 = scalar_select %p46, %s47, %s48
      %p52 = pneg %p46
      %p53 = scmp.eq.s32.totalorder %s11, 1
      %p54 = por %p52, %p53
      %p55 = scmp.ne.s32.totalorder %s47, %s50
      %p56 = scmp.eq.s32.totalorder %s11, 0
      %p57 = por %p55, %p56
      %p58 = scmp.ne.s32.totalorder %s47, %s50
      %p59 = scmp.eq.s32.totalorder %s16, 1
      %p60 = por %p58, %p59
      %p61 = scmp.ne.s32.totalorder %s50, %s51
      %p62 = scmp.eq.s32.totalorder %s16, 0
      %p63 = por %p61, %p62
      %p64 = scmp.ne.s32.totalorder %s50, %s51
      %p65 = scmp.eq.s32.totalorder %s17, 1
      %p66 = por %p64, %p65
      %p68 = scmp.ne.s32.totalorder %s51, %s67
      %p69 = scmp.eq.s32.totalorder %s17, 0
      %p70 = por %p68, %p69
      %s72 = sadd.s32 %s71, 1
      %p75 = scmp.eq.s32.totalorder %s11, 1
      %p76 = scmp.ne.s32.totalorder %s71, %s73
      %p77 = scmp.eq.s32.totalorder %s11, 0
      %p78 = por %p76, %p77
      %p79 = scmp.ne.s32.totalorder %s71, %s73
      %p80 = scmp.eq.s32.totalorder %s16, 1
      %p81 = por %p79, %p80
      %p82 = scmp.ne.s32.totalorder %s73, %s74
      %p83 = scmp.eq.s32.totalorder %s16, 0
      %p84 = por %p82, %p83
      %p85 = scmp.ne.s32.totalorder %s73, %s74
      %p86 = scmp.eq.s32.totalorder %s17, 1
      %p87 = por %p85, %p86
      %p89 = scmp.ne.s32.totalorder %s74, %s88
      %p90 = scmp.eq.s32.totalorder %s17, 0
      %p91 = por %p89, %p90
      %s93 = sadd.s32 %s92, 1
      %p96 = scmp.eq.s32.totalorder %s11, 1
      %p97 = scmp.ne.s32.totalorder %s92, %s94
      %p98 = scmp.eq.s32.totalorder %s11, 0
      %p99 = por %p97, %p98
      %p100 = scmp.ne.s32.totalorder %s92, %s94
      %p101 = scmp.eq.s32.totalorder %s16, 1
      %p102 = por %p100, %p101
      %p103 = scmp.ne.s32.totalorder %s94, %s95
      %p104 = scmp.eq.s32.totalorder %s16, 0
      %p105 = por %p103, %p104
      %p106 = scmp.ne.s32.totalorder %s94, %s95
      %p107 = scmp.eq.s32.totalorder %s17, 1
      %p108 = por %p106, %p107
      %p110 = scmp.ne.s32.totalorder %s95, %s109
      %p111 = scmp.eq.s32.totalorder %s17, 0
      %p112 = por %p110, %p111
      %s114 = sadd.s32 %s113, 1
      %p117 = scmp.eq.s32.totalorder %s11, 1
      %p118 = scmp.ne.s32.totalorder %s113, %s115
      %p119 = scmp.eq.s32.totalorder %s11, 0
      %p120 = por %p118, %p119
      %p121 = scmp.ne.s32.totalorder %s113, %s115
      %p122 = scmp.eq.s32.totalorder %s16, 1
      %p123 = por %p121, %p122
      %p124 = scmp.ne.s32.totalorder %s115, %s116
      %p125 = scmp.eq.s32.totalorder %s16, 0
      %p126 = por %p124, %p125
      %p127 = scmp.ne.s32.totalorder %s115, %s116
      %p128 = scmp.eq.s32.totalorder %s17, 1
      %p129 = por %p127, %p128
      %p131 = scmp.ne.s32.totalorder %s116, %s130
      %p132 = scmp.eq.s32.totalorder %s17, 0
      %p133 = por %p131, %p132
      %p134 = scmp.le.s32.totalorder 1, %s11
      %p135 = scmp.lt.s32.totalorder %s11, 3
      %p136 = pnand %p134, %p135
      %p137 = pneg %p136
      // Predicated region
      $region9: #{gcn_model_forward.5} parent=5 // pred_check
        _
      $region10: #{gcn_model_forward.5} parent=5 // pred_check_branch
        %139 = sbr.rel (%p136) target = $region12
      $region11: #{gcn_model_forward.5} parent=5 // pred_region
        %s140 = ssub.s32 %s11, 1
        // Predicated region
        $region13: #{gcn_model_forward.5} parent=11 // pred_check
          %p141 = pneg %p84
        $region14: #{gcn_model_forward.5} parent=11 // pred_check_branch
          %143 = sbr.rel (%p141) target = $region16
        $region15: #{gcn_model_forward.5} parent=11 // pred_region
          _
        $region16: #{gcn_model_forward.5} parent=11 // pred_fallthru
          _
        // Predicated region
        $region17: #{gcn_model_forward.5} parent=11 // pred_check
          %p144 = pneg %p105
        $region18: #{gcn_model_forward.5} parent=11 // pred_check_branch
          %146 = sbr.rel (%p144) target = $region20
        $region19: #{gcn_model_forward.5} parent=11 // pred_region
          _
        $region20: #{gcn_model_forward.5} parent=11 // pred_fallthru
          _
      $region12: #{gcn_model_forward.5} parent=5 // pred_fallthru
        _
      %p147 = scmp.lt.s32.totalorder %s11, 2
      // Predicated region
      $region21: #{gcn_model_forward.5} parent=5 // pred_check
        %p148 = pneg %p147
      $region22: #{gcn_model_forward.5} parent=5 // pred_check_branch
        %150 = sbr.rel (%p148) target = $region24
      $region23: #{gcn_model_forward.5} parent=5 // pred_region
        // Predicated region
        $region25: #{gcn_model_forward.5} parent=23 // pred_check
          %p151 = pneg %p31
        $region26: #{gcn_model_forward.5} parent=23 // pred_check_branch
          %153 = sbr.rel (%p151) target = $region28
        $region27: #{gcn_model_forward.5} parent=23 // pred_region
          %p154 = scmp.lt.s32.totalorder %s11, 1
          %s155 = scalar_select %p154, %s11, 1
          %s156 = smul.addr %s155, 4
          %s157 = scalar_lea.vmem %s0, %s156
        $region28: #{gcn_model_forward.5} parent=23 // pred_fallthru
          _
        // Predicated region
        $region29: #{gcn_model_forward.5} parent=23 // pred_check
          %p158 = pneg %p57
        $region30: #{gcn_model_forward.5} parent=23 // pred_check_branch
          %160 = sbr.rel (%p158) target = $region32
        $region31: #{gcn_model_forward.5} parent=23 // pred_region
          %s161 = smul.u32 16, %s11
          %p162 = scmp.lt.s32.totalorder %s161, 31
          %s163 = scalar_select %p162, %s161, 31
          %s164 = smul.addr %s163, 4
          %s165 = scalar_lea.vmem %s1, %s164
          %s166 = smul.u32 16, %s11
        $region32: #{gcn_model_forward.5} parent=23 // pred_fallthru
          _
      $region24: #{gcn_model_forward.5} parent=5 // pred_fallthru
        _
      %p167 = scmp.le.s32.totalorder 1, %s11
      %p168 = scmp.lt.s32.totalorder %s11, 3
      %p169 = pnand %p167, %p168
      %p170 = pneg %p169
      // Predicated region
      $region33: #{gcn_model_forward.5} parent=5 // pred_check
        _
      $region34: #{gcn_model_forward.5} parent=5 // pred_check_branch
        %172 = sbr.rel (%p169) target = $region36
      $region35: #{gcn_model_forward.5} parent=5 // pred_region
        %s173 = ssub.s32 %s11, 1
        %p174 = scmp.lt.s32.totalorder %s16, 1
        %s175 = scalar_select %p174, %s16, 1
        %s176 = smul.addr %s175, 4
        %s177 = scalar_lea.vmem %s0, %s176
        %p178 = pneg %p37
        %p179 = pneg %p34
        %s180 = smul.u32 16, %s16
        %p181 = scmp.lt.s32.totalorder %s180, 31
        %s182 = scalar_select %p181, %s180, 31
        %s183 = smul.addr %s182, 4
        %s184 = scalar_lea.vmem %s1, %s183
        %p185 = pneg %p63
        %p186 = pneg %p60
        %p187 = pneg %p84
        %p188 = pneg %p81
        %p189 = pneg %p105
        %p190 = pneg %p102
        %p191 = pneg %p126
        %p192 = pneg %p123
        %p193 = scmp.lt.s32.totalorder %s16, 1
        %s194 = scalar_select %p193, %s16, 1
        %s195 = smul.addr %s194, 4
        %s196 = scalar_lea.vmem %s0, %s195
        %s197 = smul.u32 16, %s16
        %p198 = scmp.lt.s32.totalorder %s197, 31
        %s199 = scalar_select %p198, %s197, 31
        %s200 = smul.addr %s199, 4
        %s201 = scalar_lea.vmem %s1, %s200
        %s202 = smul.u32 16, %s16
        %p203 = scmp.eq.s32.totalorder %s16, 0
        // Predicated region
        $region37: #{gcn_model_forward.5} parent=35 // pred_check
          %p204 = pneg %p203
        $region38: #{gcn_model_forward.5} parent=35 // pred_check_branch
          %206 = sbr.rel (%p204) target = $region40
        $region39: #{gcn_model_forward.5} parent=35 // pred_region
          %207 = vst [vmem:[#allocation2] sm:$0xf] 0.0
        $region40: #{gcn_model_forward.5} parent=35 // pred_fallthru
          _
        %v208 = vld [vmem:[#allocation2] sm:$0xf]
        %v209 = vld [vmem:[%s196] sm:$0xf]
        %v210 = vld [vmem:[%s201] sm:$0xf]
        %v211 = vld [vmem:[%s201 + $0x4] sm:$0xf]
        %v212 = vld [vmem:[%s201 + $0x8] sm:$0xf]
        %v213 = vld [vmem:[%s201 + $0xc] sm:$0xf]
        %v214 = vld [vmem:[%s201 + $0x10] sm:$0xf]
        %v215 = vld [vmem:[%s201 + $0x14] sm:$0xf]
        %v216 = vld [vmem:[%s201 + $0x18] sm:$0xf]
        %v217 = vld [vmem:[%s201 + $0x1c] sm:$0xf]
        %v218 = vld [vmem:[%s201 + $0x20] sm:$0xf]
        %v219 = vld [vmem:[%s201 + $0x24] sm:$0xf]
        %v220 = vld [vmem:[%s201 + $0x28] sm:$0xf]
        %v221 = vld [vmem:[%s201 + $0x2c] sm:$0xf]
        %v222 = vld [vmem:[%s201 + $0x30] sm:$0xf]
        %v223 = vld [vmem:[%s201 + $0x34] sm:$0xf]
        %v224 = vld [vmem:[%s201 + $0x38] sm:$0xf]
        %v225 = vld [vmem:[%s201 + $0x3c] sm:$0xf]
        %v226 = vunpack.c.l.bf16 %v210
        %v227 = vunpack.c.l.bf16 %v211
        %v228 = vunpack.c.l.bf16 %v212
        %v229 = vunpack.c.l.bf16 %v213
        %v230 = vunpack.c.l.bf16 %v214
        %v231 = vunpack.c.l.bf16 %v215
        %v232 = vunpack.c.l.bf16 %v216
        %v233 = vunpack.c.l.bf16 %v217
        %v234 = vunpack.c.l.bf16 %v218
        %v235 = vunpack.c.l.bf16 %v219
        %v236 = vunpack.c.l.bf16 %v220
        %v237 = vunpack.c.l.bf16 %v221
        %v238 = vunpack.c.l.bf16 %v222
        %v239 = vunpack.c.l.bf16 %v223
        %v240 = vunpack.c.l.bf16 %v224
        %v241 = vunpack.c.l.bf16 %v225
        %242 = vmatprep.subr.mxu0 0.0
        %243 = vmatpush1.msra.mxu0 %v241
        %244 = vmatprep.subr.mxu0 0.0
        %245 = vmatpush1.msra.mxu0 %v240
        %246 = vmatprep.subr.mxu0 0.0
        %247 = vmatpush1.msra.mxu0 %v239
        %248 = vmatprep.subr.mxu0 0.0
        %249 = vmatpush1.msra.mxu0 %v238
        %250 = vmatprep.subr.mxu0 0.0
        %251 = vmatpush1.msra.mxu0 %v237
        %252 = vmatprep.subr.mxu0 0.0
        %253 = vmatpush1.msra.mxu0 %v236
        %254 = vmatprep.subr.mxu0 0.0
        %255 = vmatpush1.msra.mxu0 %v235
        %256 = vmatprep.subr.mxu0 0.0
        %257 = vmatpush1.msra.mxu0 %v234
        %258 = vmatprep.subr.mxu0 0.0
        %259 = vmatpush1.msra.mxu0 %v233
        %260 = vmatprep.subr.mxu0 0.0
        %261 = vmatpush1.msra.mxu0 %v232
        %262 = vmatprep.subr.mxu0 0.0
        %263 = vmatpush1.msra.mxu0 %v231
        %264 = vmatprep.subr.mxu0 0.0
        %265 = vmatpush1.msra.mxu0 %v230
        %266 = vmatprep.subr.mxu0 0.0
        %267 = vmatpush1.msra.mxu0 %v229
        %268 = vmatprep.subr.mxu0 0.0
        %269 = vmatpush1.msra.mxu0 %v228
        %270 = vmatprep.subr.mxu0 0.0
        %271 = vmatpush1.msra.mxu0 %v227
        %272 = vmatprep.subr.mxu0 0.0
        %273 = vmatpush1.msra.mxu0 %v226
        %274 = vmatprep.subr.mxu0 0.0
        %275 = vmatpush2.msra.mxu0 0.0
        %276 = vmatprep.subr.mxu0 0.0
        %277 = vmatpush2.msra.mxu0 0.0
        %278 = vmatprep.subr.mxu0 0.0
        %279 = vmatpush2.msra.mxu0 0.0
        %280 = vmatprep.subr.mxu0 0.0
        %281 = vmatpush2.msra.mxu0 0.0
        %282 = vmatprep.subr.mxu0 0.0
        %283 = vmatpush2.msra.mxu0 0.0
        %284 = vmatprep.subr.mxu0 0.0
        %285 = vmatpush2.msra.mxu0 0.0
        %286 = vmatprep.subr.mxu0 0.0
        %287 = vmatpush2.msra.mxu0 0.0
        %288 = vmatprep.subr.mxu0 0.0
        %289 = vmatpush2.msra.mxu0 0.0
        %290 = vmatprep.subr.mxu0 0.0
        %291 = vmatpush2.msra.mxu0 0.0
        %292 = vmatprep.subr.mxu0 0.0
        %293 = vmatpush2.msra.mxu0 0.0
        %294 = vmatprep.subr.mxu0 0.0
        %295 = vmatpush2.msra.mxu0 0.0
        %296 = vmatprep.subr.mxu0 0.0
        %297 = vmatpush2.msra.mxu0 0.0
        %298 = vmatprep.subr.mxu0 0.0
        %299 = vmatpush2.msra.mxu0 0.0
        %300 = vmatprep.subr.mxu0 0.0
        %301 = vmatpush2.msra.mxu0 0.0
        %302 = vmatprep.subr.mxu0 0.0
        %303 = vmatpush2.msra.mxu0 0.0
        %304 = vmatprep.subr.mxu0 0.0
        %305 = vmatpush2.msra.mxu0 0.0
        %306 = vmatprep.mubr.f32.mxu0 0.0
        %307 = vmatmul.mubr.f32.gmra.mxu0 %v209
        %v308 = vpop.f32.mrf.mxu0
        %v309 = vadd.f32 0.0, %v308
        %v310 = vpop.f32.mrf.mxu0
        %311 = vdwg.mxu0
        %v312 = vadd.f32 %v208, %v309
        %313 = vst [vmem:[#allocation2] sm:$0xf] %v312
        %p314 = scmp.eq.s32.totalorder %s16, 1
        // Predicated region
        $region41: #{gcn_model_forward.5} parent=35 // pred_check
          %p315 = pneg %p314
        $region42: #{gcn_model_forward.5} parent=35 // pred_check_branch
          %317 = sbr.rel (%p315) target = $region44
        $region43: #{gcn_model_forward.5} parent=35 // pred_region
          %v318 = vld [vmem:[#allocation2] sm:$0xf]
          %v319 = vld [vmem:[%s2] sm:$0xff]
          %v320 = vld [vmem:[%s2 + $0x8] sm:$0xff]
          %v321 = vld [vmem:[%s2 + $0x10] sm:$0xff]
          %v322 = vld [vmem:[%s2 + $0x18] sm:$0xff]
          %v323 = vld [vmem:[%s2 + $0x20] sm:$0xff]
          %v324 = vld [vmem:[%s2 + $0x28] sm:$0xff]
          %v325 = vld [vmem:[%s2 + $0x30] sm:$0xff]
          %v326 = vld [vmem:[%s2 + $0x38] sm:$0xff]
          %v327 = vld [vmem:[%s2 + $0x40] sm:$0xff]
          %v328 = vld [vmem:[%s2 + $0x48] sm:$0xff]
          %v329 = vld [vmem:[%s2 + $0x50] sm:$0xff]
          %v330 = vld [vmem:[%s2 + $0x58] sm:$0xff]
          %v331 = vld [vmem:[%s2 + $0x60] sm:$0xff]
          %v332 = vld [vmem:[%s2 + $0x68] sm:$0xff]
          %v333 = vld [vmem:[%s2 + $0x70] sm:$0xff]
          %v334 = vld [vmem:[%s2 + $0x78] sm:$0xff]
          %v335 = vld [vmem:[%s3] sm:$0x1]
          %v337 = vlaneseq
          %v338 = vshrl.u32 %v337, 7
          %v339 = vsub.s32 0, %v338
          %v340 = vrot.slane %v335, %v339
          %342 = vmatprep.subr.mxu0 0.0
          %343 = vmatpush1.msra.mxu0 %v334
          %344 = vmatprep.subr.mxu0 0.0
          %345 = vmatpush1.msra.mxu0 %v333
          %346 = vmatprep.subr.mxu0 0.0
          %347 = vmatpush1.msra.mxu0 %v332
          %348 = vmatprep.subr.mxu0 0.0
          %349 = vmatpush1.msra.mxu0 %v331
          %350 = vmatprep.subr.mxu0 0.0
          %351 = vmatpush1.msra.mxu0 %v330
          %352 = vmatprep.subr.mxu0 0.0
          %353 = vmatpush1.msra.mxu0 %v329
          %354 = vmatprep.subr.mxu0 0.0
          %355 = vmatpush1.msra.mxu0 %v328
          %356 = vmatprep.subr.mxu0 0.0
          %357 = vmatpush1.msra.mxu0 %v327
          %358 = vmatprep.subr.mxu0 0.0
          %359 = vmatpush1.msra.mxu0 %v326
          %360 = vmatprep.subr.mxu0 0.0
          %361 = vmatpush1.msra.mxu0 %v325
          %362 = vmatprep.subr.mxu0 0.0
          %363 = vmatpush1.msra.mxu0 %v324
          %364 = vmatprep.subr.mxu0 0.0
          %365 = vmatpush1.msra.mxu0 %v323
          %366 = vmatprep.subr.mxu0 0.0
          %367 = vmatpush1.msra.mxu0 %v322
          %368 = vmatprep.subr.mxu0 0.0
          %369 = vmatpush1.msra.mxu0 %v321
          %370 = vmatprep.subr.mxu0 0.0
          %371 = vmatpush1.msra.mxu0 %v320
          %372 = vmatprep.subr.mxu0 0.0
          %373 = vmatpush1.msra.mxu0 %v319
          %374 = vmatprep.subr.mxu0 0.0
          %375 = vmatpush2.msra.mxu0 0.0
          %376 = vmatprep.subr.mxu0 0.0
          %377 = vmatpush2.msra.mxu0 0.0
          %378 = vmatprep.subr.mxu0 0.0
          %379 = vmatpush2.msra.mxu0 0.0
          %380 = vmatprep.subr.mxu0 0.0
          %381 = vmatpush2.msra.mxu0 0.0
          %382 = vmatprep.subr.mxu0 0.0
          %383 = vmatpush2.msra.mxu0 0.0
          %384 = vmatprep.subr.mxu0 0.0
          %385 = vmatpush2.msra.mxu0 0.0
          %386 = vmatprep.subr.mxu0 0.0
          %387 = vmatpush2.msra.mxu0 0.0
          %388 = vmatprep.subr.mxu0 0.0
          %389 = vmatpush2.msra.mxu0 0.0
          %390 = vmatprep.subr.mxu0 0.0
          %391 = vmatpush2.msra.mxu0 0.0
          %392 = vmatprep.subr.mxu0 0.0
          %393 = vmatpush2.msra.mxu0 0.0
          %394 = vmatprep.subr.mxu0 0.0
          %395 = vmatpush2.msra.mxu0 0.0
          %396 = vmatprep.subr.mxu0 0.0
          %397 = vmatpush2.msra.mxu0 0.0
          %398 = vmatprep.subr.mxu0 0.0
          %399 = vmatpush2.msra.mxu0 0.0
          %400 = vmatprep.subr.mxu0 0.0
          %401 = vmatpush2.msra.mxu0 0.0
          %402 = vmatprep.subr.mxu0 0.0
          %403 = vmatpush2.msra.mxu0 0.0
          %404 = vmatprep.subr.mxu0 0.0
          %405 = vmatpush2.msra.mxu0 0.0
          %406 = vmatprep.mubr.f32.mxu0 0.0
          %407 = vmatmul.mubr.f32.gmra.mxu0 %v318
          %v408 = vpop.f32.mrf.mxu0
          %v409 = vadd.f32 %v340, %v408
          %v410 = vpop.f32.mrf.mxu0
          %411 = vdwg.mxu0
          %412 = vst [vmem:[#allocation3] sm:$0xf] %v409
        $region44: #{gcn_model_forward.5} parent=35 // pred_fallthru
          _
        // Predicated region
        $region45: #{gcn_model_forward.5} parent=35 // pred_check
          %p413 = pneg %p123
        $region46: #{gcn_model_forward.5} parent=35 // pred_check_branch
          %415 = sbr.rel (%p413) target = $region48
        $region47: #{gcn_model_forward.5} parent=35 // pred_region
          %s417 = ssub.s32 64, 64
          %418 = vsyncadd [#allocation4], %s417
          %s420 = sshll.u32 [#allocation3], 4
          %s421 = int_to_ptr.vmem [resolvable:$true] %s420
          %423 = dma.vmem_to_hbm [thread:$0]  %s421, 64, %s4, [#allocation4]
        $region48: #{gcn_model_forward.5} parent=35 // pred_fallthru
          _
        // Predicated region
        $region49: #{gcn_model_forward.5} parent=35 // pred_check
          %p424 = pneg %p123
        $region50: #{gcn_model_forward.5} parent=35 // pred_check_branch
          %426 = sbr.rel (%p424) target = $region52
        $region51: #{gcn_model_forward.5} parent=35 // pred_region
          %427 = dma.done [#allocation4], 64
        $region52: #{gcn_model_forward.5} parent=35 // pred_fallthru
          _
      $region36: #{gcn_model_forward.5} parent=5 // pred_fallthru
        _
      %p428 = scmp.le.s32.totalorder 2, %s11
      // Predicated region
      $region53: #{gcn_model_forward.5} parent=5 // pred_check
        %p429 = pneg %p428
      $region54: #{gcn_model_forward.5} parent=5 // pred_check_branch
        %431 = sbr.rel (%p429) target = $region56
      $region55: #{gcn_model_forward.5} parent=5 // pred_region
        %s432 = ssub.s32 %s11, 2
      $region56: #{gcn_model_forward.5} parent=5 // pred_fallthru
        _
    $region6: #{gcn_model_forward.5} parent=1 // loop_footer
      %s15 = sadd.s32 1, %s11
    $region7: #{gcn_model_forward.5} parent=1 // loop_footer_branch
      %10 = sbr.rel target = $region3
    $region8: #{gcn_model_forward.5} parent=1 // loop_exit
      _
    %433 = vsyncpa [#allocation4], 1
    %s434 = scalar_lea.sflag [#allocation4], 1
    %435 = vsyncpa %s434, 1

// kernel: gcn_model_forward.4
$region0: #{gcn_model_forward.4}
  #allocation0 [shape = 'u32[]', space=smem, size = 0x4, offset = 0x4, fixed_abs, tag = 'smem constant byte address 0x4 - core index']
  #allocation1 [shape = 'u32[144,128]{1,0:T(1,128)}', space=vmem, size = 0x12000, scoped, tag = 'internal scratch']
  #allocation2 [shape = 'f32[128,128]{1,0:T(8,128)}', space=vmem, size = 0x10000, scoped, tag = 'scratch operand']
  %s0 = inlined_call_operand.vmem [shape: bf16[256,256], index: 0, kind: input, shape index: {}]
  %s1 = inlined_call_operand.vmem [shape: bf16[256,128], index: 1, kind: input, shape index: {}]
  %s2 = inlined_call_operand.vmem [shape: f32[128,128], index: 2, kind: input, shape index: {}]
  %s3 = inlined_call_operand.vmem [shape: f32[1,128], index: 3, kind: input, shape index: {}]
  %s4 = inlined_call_operand.vmem [shape: bf16[256,128], index: 4, kind: output, shape index: {}]
  %s5 = sld [smem:[#allocation0]]
  $region98: #{gcn_model_forward.4} parent=0
    _
  %s7 = ssub.s32 1, %s5
  %s8 = scalar_select 0, %s7, %s5
  $region1: #{gcn_model_forward.4} parent=0
    #allocation3 [shape = 'u8[65536]{0}', space=vmem, size = 0x10000, scoped, tag = 'input window, operand 0']
    loop: start=0, step=1, limit=6
    $region2: #{gcn_model_forward.4} parent=1 // loop_pre_header
      _
    $region3: #{gcn_model_forward.4} parent=1 // loop_header
      %s10 = sphi 0, %s14
      %p11 = scmp.ge.s32.totalorder %s10, 6
      %s17 = sphi 0, %s29
      %s18 = sphi 0, %s25
      %s19 = sphi 0, %s17
      %s20 = sphi 0, %s18
      %s21 = sphi 0, %s19
      %s22 = sphi 0, %s20
      %s34 = sphi 0, %s36
      %s37 = sphi 0, %s34
      %s38 = sphi 0, %s37
      %s54 = sphi 0, %s38
      %s60 = sphi 0, %s62
      %s63 = sphi 0, %s60
      %s64 = sphi 0, %s63
      %s80 = sphi 0, %s64
      %s84 = sphi 0, %s84
      %s86 = sphi 0, %s84
      %s87 = sphi 0, %s86
      %s101 = sphi 0, %s87
      %s105 = sphi 0, %s105
      %s107 = sphi 0, %s105
      %s108 = sphi 0, %s107
      %s122 = sphi 0, %s108
      %s128 = sphi 0, %s130
      %s131 = sphi 0, %s128
      %s132 = sphi 0, %s131
      %s148 = sphi 0, %s132
    $region4: #{gcn_model_forward.4} parent=1 // loop_header_branch
      %13 = sbr.rel (%p11) target = $region8
    $region5: #{gcn_model_forward.4} parent=1 // loop_body
      %s15 = ssub.s32 %s10, 1
      %s16 = ssub.s32 %s10, 2
      %s23 = sadd.s32 1, %s18
      %p24 = scmp.ge.s32.totalorder %s23, 2
      %s25 = scalar_select %p24, 0, %s23
      %s26 = sadd.s32 1, %s17
      %s27 = scalar_select %p24, %s26, %s17
      %p28 = scmp.ge.s32.totalorder %s27, 2
      %s29 = scalar_select %p28, 0, %s27
      %s30 = ssub.s32 %s17, %s29
      %s31 = ssub.s32 %s18, %s25
      %s32 = sor.u32 %s30, %s31
      %p33 = scmp.eq.s32.totalorder %s32, 0
      %s35 = sadd.s32 %s34, 1
      %s36 = scalar_select %p33, %s34, %s35
      %p39 = pneg %p33
      %p40 = scmp.eq.s32.totalorder %s10, 3
      %p41 = por %p39, %p40
      %p42 = scmp.ne.s32.totalorder %s34, %s37
      %p43 = scmp.eq.s32.totalorder %s10, 0
      %p44 = por %p42, %p43
      %p45 = scmp.ne.s32.totalorder %s34, %s37
      %p46 = scmp.eq.s32.totalorder %s15, 3
      %p47 = por %p45, %p46
      %p48 = scmp.ne.s32.totalorder %s37, %s38
      %p49 = scmp.eq.s32.totalorder %s15, 0
      %p50 = por %p48, %p49
      %p51 = scmp.ne.s32.totalorder %s37, %s38
      %p52 = scmp.eq.s32.totalorder %s16, 3
      %p53 = por %p51, %p52
      %p55 = scmp.ne.s32.totalorder %s38, %s54
      %p56 = scmp.eq.s32.totalorder %s16, 0
      %p57 = por %p55, %p56
      %s58 = ssub.s32 %s18, %s25
      %p59 = scmp.eq.s32.totalorder %s58, 0
      %s61 = sadd.s32 %s60, 1
      %s62 = scalar_select %p59, %s60, %s61
      %p65 = pneg %p59
      %p66 = scmp.eq.s32.totalorder %s10, 3
      %p67 = por %p65, %p66
      %p68 = scmp.ne.s32.totalorder %s60, %s63
      %p69 = scmp.eq.s32.totalorder %s10, 0
      %p70 = por %p68, %p69
      %p71 = scmp.ne.s32.totalorder %s60, %s63
      %p72 = scmp.eq.s32.totalorder %s15, 3
      %p73 = por %p71, %p72
      %p74 = scmp.ne.s32.totalorder %s63, %s64
      %p75 = scmp.eq.s32.totalorder %s15, 0
      %p76 = por %p74, %p75
      %p77 = scmp.ne.s32.totalorder %s63, %s64
      %p78 = scmp.eq.s32.totalorder %s16, 3
      %p79 = por %p77, %p78
      %p81 = scmp.ne.s32.totalorder %s64, %s80
      %p82 = scmp.eq.s32.totalorder %s16, 0
      %p83 = por %p81, %p82
      %s85 = sadd.s32 %s84, 1
      %p88 = scmp.eq.s32.totalorder %s10, 3
      %p89 = scmp.ne.s32.totalorder %s84, %s86
      %p90 = scmp.eq.s32.totalorder %s10, 0
      %p91 = por %p89, %p90
      %p92 = scmp.ne.s32.totalorder %s84, %s86
      %p93 = scmp.eq.s32.totalorder %s15, 3
      %p94 = por %p92, %p93
      %p95 = scmp.ne.s32.totalorder %s86, %s87
      %p96 = scmp.eq.s32.totalorder %s15, 0
      %p97 = por %p95, %p96
      %p98 = scmp.ne.s32.totalorder %s86, %s87
      %p99 = scmp.eq.s32.totalorder %s16, 3
      %p100 = por %p98, %p99
      %p102 = scmp.ne.s32.totalorder %s87, %s101
      %p103 = scmp.eq.s32.totalorder %s16, 0
      %p104 = por %p102, %p103
      %s106 = sadd.s32 %s105, 1
      %p109 = scmp.eq.s32.totalorder %s10, 3
      %p110 = scmp.ne.s32.totalorder %s105, %s107
      %p111 = scmp.eq.s32.totalorder %s10, 0
      %p112 = por %p110, %p111
      %p113 = scmp.ne.s32.totalorder %s105, %s107
      %p114 = scmp.eq.s32.totalorder %s15, 3
      %p115 = por %p113, %p114
      %p116 = scmp.ne.s32.totalorder %s107, %s108
      %p117 = scmp.eq.s32.totalorder %s15, 0
      %p118 = por %p116, %p117
      %p119 = scmp.ne.s32.totalorder %s107, %s108
      %p120 = scmp.eq.s32.totalorder %s16, 3
      %p121 = por %p119, %p120
      %p123 = scmp.ne.s32.totalorder %s108, %s122
      %p124 = scmp.eq.s32.totalorder %s16, 0
      %p125 = por %p123, %p124
      %s126 = ssub.s32 %s17, %s29
      %p127 = scmp.eq.s32.totalorder %s126, 0
      %s129 = sadd.s32 %s128, 1
      %s130 = scalar_select %p127, %s128, %s129
      %p133 = pneg %p127
      %p134 = scmp.eq.s32.totalorder %s10, 3
      %p135 = por %p133, %p134
      %p136 = scmp.ne.s32.totalorder %s128, %s131
      %p137 = scmp.eq.s32.totalorder %s10, 0
      %p138 = por %p136, %p137
      %p139 = scmp.ne.s32.totalorder %s128, %s131
      %p140 = scmp.eq.s32.totalorder %s15, 3
      %p141 = por %p139, %p140
      %p142 = scmp.ne.s32.totalorder %s131, %s132
      %p143 = scmp.eq.s32.totalorder %s15, 0
      %p144 = por %p142, %p143
      %p145 = scmp.ne.s32.totalorder %s131, %s132
      %p146 = scmp.eq.s32.totalorder %s16, 3
      %p147 = por %p145, %p146
      %p149 = scmp.ne.s32.totalorder %s132, %s148
      %p150 = scmp.eq.s32.totalorder %s16, 0
      %p151 = por %p149, %p150
      %p152 = scmp.le.s32.totalorder 1, %s10
      %p153 = scmp.lt.s32.totalorder %s10, 5
      %p154 = pnand %p152, %p153
      %p155 = pneg %p154
      // Predicated region
      $region9: #{gcn_model_forward.4} parent=5 // pred_check
        _
      $region10: #{gcn_model_forward.4} parent=5 // pred_check_branch
        %157 = sbr.rel (%p154) target = $region12
      $region11: #{gcn_model_forward.4} parent=5 // pred_region
        %s158 = ssub.s32 %s10, 1
        // Predicated region
        $region13: #{gcn_model_forward.4} parent=11 // pred_check
          %p159 = pneg %p97
        $region14: #{gcn_model_forward.4} parent=11 // pred_check_branch
          %161 = sbr.rel (%p159) target = $region16
        $region15: #{gcn_model_forward.4} parent=11 // pred_region
          _
        $region16: #{gcn_model_forward.4} parent=11 // pred_fallthru
          _
        // Predicated region
        $region17: #{gcn_model_forward.4} parent=11 // pred_check
          %p162 = pneg %p118
        $region18: #{gcn_model_forward.4} parent=11 // pred_check_branch
          %164 = sbr.rel (%p162) target = $region20
        $region19: #{gcn_model_forward.4} parent=11 // pred_region
          _
        $region20: #{gcn_model_forward.4} parent=11 // pred_fallthru
          _
      $region12: #{gcn_model_forward.4} parent=5 // pred_fallthru
        _
      %p165 = scmp.lt.s32.totalorder %s10, 4
      // Predicated region
      $region21: #{gcn_model_forward.4} parent=5 // pred_check
        %p166 = pneg %p165
      $region22: #{gcn_model_forward.4} parent=5 // pred_check_branch
        %168 = sbr.rel (%p166) target = $region24
      $region23: #{gcn_model_forward.4} parent=5 // pred_region
        // Predicated region
        $region25: #{gcn_model_forward.4} parent=23 // pred_check
          %p169 = pneg %p44
        $region26: #{gcn_model_forward.4} parent=23 // pred_check_branch
          %171 = sbr.rel (%p169) target = $region28
        $region27: #{gcn_model_forward.4} parent=23 // pred_region
          %s172 = sand.u32 %s34, 1
          %s173 = sand.u32 %s34, 1
          %s174 = smul.addr %s173, 64
          %s175 = scalar_lea.vmem [#allocation3], %s174
          %s176 = smul.u32 16, %s17
          %s177 = smul.addr %s176, 2
          %s178 = sadd.s32 %s18, %s177
          %s179 = smul.addr %s178, 4
          %s180 = scalar_lea.vmem %s0, %s179
          // Predicated region
          $region29: #{gcn_model_forward.4} parent=27 // pred_check
            _
          $region30: #{gcn_model_forward.4} parent=27 // pred_check_branch
            %182 = sbr.rel (0) target = $region32
          $region31: #{gcn_model_forward.4} parent=27 // pred_region
            // Predicated region
            $region33: #{gcn_model_forward.4} parent=31 // pred_check
              _
            $region34: #{gcn_model_forward.4} parent=31 // pred_check_branch
              %184 = sbr.rel target = $region36
            $region35: #{gcn_model_forward.4} parent=31 // pred_region
              // Predicated region
              $region48: #{gcn_model_forward.4} parent=35 // pred_check
                _
              $region49: #{gcn_model_forward.4} parent=35 // pred_check_branch
                %230 = sbr.rel (0) target = $region51
              $region50: #{gcn_model_forward.4} parent=35 // pred_region
                loop: start=0, step=1, limit=1
                $region52: #{gcn_model_forward.4} parent=50 // loop_pre_header
                  _
                $region53: #{gcn_model_forward.4} parent=50 // loop_header
                  %s232 = sphi 0, %s236
                  %p233 = scmp.ge.s32.totalorder %s232, 1
                  %s237 = sphi %s180, %s180
                  %s238 = sphi %s175, %s175
                $region54: #{gcn_model_forward.4} parent=50 // loop_header_branch
                  %235 = sbr.rel (%p233) target = $region58
                $region55: #{gcn_model_forward.4} parent=50 // loop_body
                  _
                $region56: #{gcn_model_forward.4} parent=50 // loop_footer
                  %s236 = sadd.s32 1, %s232
                $region57: #{gcn_model_forward.4} parent=50 // loop_footer_branch
                  %231 = sbr.rel target = $region53
                $region58: #{gcn_model_forward.4} parent=50 // loop_exit
                  _
                %s240 = ssub.s32 16, 1
                loop: start=0, step=1, limit=1
                $region59: #{gcn_model_forward.4} parent=50 // loop_pre_header
                  _
                $region60: #{gcn_model_forward.4} parent=50 // loop_header
                  %s242 = sphi 0, %s246
                  %p243 = scmp.ge.s32.totalorder %s242, 1
                  %s247 = sphi %s180, %s180
                  %s248 = sphi %s175, %s175
                $region61: #{gcn_model_forward.4} parent=50 // loop_header_branch
                  %245 = sbr.rel (%p243) target = $region65
                $region62: #{gcn_model_forward.4} parent=50 // loop_body
                  %v249 = vld [vmem:[%s247] sm:%s240]
                  %250 = vst [vmem:[%s248] sm:%s240] %v249
                  %v251 = vld [vmem:[%s247 + $0x8] sm:%s240]
                  %252 = vst [vmem:[%s248 + $0x4] sm:%s240] %v251
                  %v253 = vld [vmem:[%s247 + $0x10] sm:%s240]
                  %254 = vst [vmem:[%s248 + $0x8] sm:%s240] %v253
                  %v255 = vld [vmem:[%s247 + $0x18] sm:%s240]
                  %256 = vst [vmem:[%s248 + $0xc] sm:%s240] %v255
                  %v257 = vld [vmem:[%s247 + $0x20] sm:%s240]
                  %258 = vst [vmem:[%s248 + $0x10] sm:%s240] %v257
                  %v259 = vld [vmem:[%s247 + $0x28] sm:%s240]
                  %260 = vst [vmem:[%s248 + $0x14] sm:%s240] %v259
                  %v261 = vld [vmem:[%s247 + $0x30] sm:%s240]
                  %262 = vst [vmem:[%s248 + $0x18] sm:%s240] %v261
                  %v263 = vld [vmem:[%s247 + $0x38] sm:%s240]
                  %264 = vst [vmem:[%s248 + $0x1c] sm:%s240] %v263
                  %v265 = vld [vmem:[%s247 + $0x40] sm:%s240]
                  %266 = vst [vmem:[%s248 + $0x20] sm:%s240] %v265
                  %v267 = vld [vmem:[%s247 + $0x48] sm:%s240]
                  %268 = vst [vmem:[%s248 + $0x24] sm:%s240] %v267
                  %v269 = vld [vmem:[%s247 + $0x50] sm:%s240]
                  %270 = vst [vmem:[%s248 + $0x28] sm:%s240] %v269
                  %v271 = vld [vmem:[%s247 + $0x58] sm:%s240]
                  %272 = vst [vmem:[%s248 + $0x2c] sm:%s240] %v271
                  %v273 = vld [vmem:[%s247 + $0x60] sm:%s240]
                  %274 = vst [vmem:[%s248 + $0x30] sm:%s240] %v273
                  %v275 = vld [vmem:[%s247 + $0x68] sm:%s240]
                  %276 = vst [vmem:[%s248 + $0x34] sm:%s240] %v275
                  %v277 = vld [vmem:[%s247 + $0x70] sm:%s240]
                  %278 = vst [vmem:[%s248 + $0x38] sm:%s240] %v277
                  %v279 = vld [vmem:[%s247 + $0x78] sm:%s240]
                  %280 = vst [vmem:[%s248 + $0x3c] sm:%s240] %v279
                $region63: #{gcn_model_forward.4} parent=50 // loop_footer
                  %s246 = sadd.s32 1, %s242
                $region64: #{gcn_model_forward.4} parent=50 // loop_footer_branch
                  %241 = sbr.rel target = $region60
                $region65: #{gcn_model_forward.4} parent=50 // loop_exit
                  _
              $region51: #{gcn_model_forward.4} parent=35 // pred_fallthru
                _
            $region36: #{gcn_model_forward.4} parent=31 // pred_fallthru
              _
            // Predicated region
            $region37: #{gcn_model_forward.4} parent=31 // pred_check
              _
            $region38: #{gcn_model_forward.4} parent=31 // pred_check_branch
              %186 = sbr.rel (0) target = $region40
            $region39: #{gcn_model_forward.4} parent=31 // pred_region
              %s188 = ssub.s32 16, 1
              loop: start=0, step=1, limit=1
              $region41: #{gcn_model_forward.4} parent=39 // loop_pre_header
                _
              $region42: #{gcn_model_forward.4} parent=39 // loop_header
                %s190 = sphi 0, %s194
                %p191 = scmp.ge.s32.totalorder %s190, 1
                %s195 = sphi %s180, %s180
                %s196 = sphi %s175, %s175
              $region43: #{gcn_model_forward.4} parent=39 // loop_header_branch
                %193 = sbr.rel (%p191) target = $region47
              $region44: #{gcn_model_forward.4} parent=39 // loop_body
                %v197 = vld [vmem:[%s195] sm:%s188]
                %198 = vst [vmem:[%s196] sm:%s188] %v197
                %v199 = vld [vmem:[%s195 + $0x8] sm:%s188]
                %200 = vst [vmem:[%s196 + $0x4] sm:%s188] %v199
                %v201 = vld [vmem:[%s195 + $0x10] sm:%s188]
                %202 = vst [vmem:[%s196 + $0x8] sm:%s188] %v201
                %v203 = vld [vmem:[%s195 + $0x18] sm:%s188]
                %204 = vst [vmem:[%s196 + $0xc] sm:%s188] %v203
                %v205 = vld [vmem:[%s195 + $0x20] sm:%s188]
                %206 = vst [vmem:[%s196 + $0x10] sm:%s188] %v205
                %v207 = vld [vmem:[%s195 + $0x28] sm:%s188]
                %208 = vst [vmem:[%s196 + $0x14] sm:%s188] %v207
                %v209 = vld [vmem:[%s195 + $0x30] sm:%s188]
                %210 = vst [vmem:[%s196 + $0x18] sm:%s188] %v209
                %v211 = vld [vmem:[%s195 + $0x38] sm:%s188]
                %212 = vst [vmem:[%s196 + $0x1c] sm:%s188] %v211
                %v213 = vld [vmem:[%s195 + $0x40] sm:%s188]
                %214 = vst [vmem:[%s196 + $0x20] sm:%s188] %v213
                %v215 = vld [vmem:[%s195 + $0x48] sm:%s188]
                %216 = vst [vmem:[%s196 + $0x24] sm:%s188] %v215
                %v217 = vld [vmem:[%s195 + $0x50] sm:%s188]
                %218 = vst [vmem:[%s196 + $0x28] sm:%s188] %v217
                %v219 = vld [vmem:[%s195 + $0x58] sm:%s188]
                %220 = vst [vmem:[%s196 + $0x2c] sm:%s188] %v219
                %v221 = vld [vmem:[%s195 + $0x60] sm:%s188]
                %222 = vst [vmem:[%s196 + $0x30] sm:%s188] %v221
                %v223 = vld [vmem:[%s195 + $0x68] sm:%s188]
                %224 = vst [vmem:[%s196 + $0x34] sm:%s188] %v223
                %v225 = vld [vmem:[%s195 + $0x70] sm:%s188]
                %226 = vst [vmem:[%s196 + $0x38] sm:%s188] %v225
                %v227 = vld [vmem:[%s195 + $0x78] sm:%s188]
                %228 = vst [vmem:[%s196 + $0x3c] sm:%s188] %v227
              $region45: #{gcn_model_forward.4} parent=39 // loop_footer
                %s194 = sadd.s32 1, %s190
              $region46: #{gcn_model_forward.4} parent=39 // loop_footer_branch
                %189 = sbr.rel target = $region42
              $region47: #{gcn_model_forward.4} parent=39 // loop_exit
                _
            $region40: #{gcn_model_forward.4} parent=31 // pred_fallthru
              _
          $region32: #{gcn_model_forward.4} parent=27 // pred_fallthru
            _
          %281 = vnop
        $region28: #{gcn_model_forward.4} parent=23 // pred_fallthru
          _
        // Predicated region
        $region66: #{gcn_model_forward.4} parent=23 // pred_check
          %p282 = pneg %p70
        $region67: #{gcn_model_forward.4} parent=23 // pred_check_branch
          %284 = sbr.rel (%p282) target = $region69
        $region68: #{gcn_model_forward.4} parent=23 // pred_region
          %s285 = smul.u32 16, %s18
          %p286 = scmp.lt.s32.totalorder %s285, 31
          %s287 = scalar_select %p286, %s285, 31
          %s288 = smul.addr %s287, 4
          %s289 = scalar_lea.vmem %s1, %s288
          %s290 = smul.u32 16, %s18
        $region69: #{gcn_model_forward.4} parent=23 // pred_fallthru
          _
      $region24: #{gcn_model_forward.4} parent=5 // pred_fallthru
        _
      %p291 = scmp.le.s32.totalorder 1, %s10
      %p292 = scmp.lt.s32.totalorder %s10, 5
      %p293 = pnand %p291, %p292
      %p294 = pneg %p293
      // Predicated region
      $region70: #{gcn_model_forward.4} parent=5 // pred_check
        _
      $region71: #{gcn_model_forward.4} parent=5 // pred_check_branch
        %296 = sbr.rel (%p293) target = $region73
      $region72: #{gcn_model_forward.4} parent=5 // pred_region
        %s297 = ssub.s32 %s10, 1
        %s298 = sand.u32 %s37, 1
        %s299 = sand.u32 %s37, 1
        %s300 = smul.addr %s299, 64
        %s301 = scalar_lea.vmem [#allocation3], %s300
        // Predicated region
        $region74: #{gcn_model_forward.4} parent=72 // pred_check
          %p302 = pneg %p50
        $region75: #{gcn_model_forward.4} parent=72 // pred_check_branch
          %304 = sbr.rel (%p302) target = $region77
        $region76: #{gcn_model_forward.4} parent=72 // pred_region
          _
        $region77: #{gcn_model_forward.4} parent=72 // pred_fallthru
          _
        %s305 = sand.u32 %s37, 1
        %s306 = sand.u32 %s37, 1
        %s307 = smul.addr %s306, 64
        %s308 = scalar_lea.vmem [#allocation3], %s307
        %p309 = pneg %p50
        %p310 = pneg %p47
        %s311 = smul.u32 16, %s20
        %p312 = scmp.lt.s32.totalorder %s311, 31
        %s313 = scalar_select %p312, %s311, 31
        %s314 = smul.addr %s313, 4
        %s315 = scalar_lea.vmem %s1, %s314
        %p316 = pneg %p76
        %p317 = pneg %p73
        %p318 = pneg %p97
        %p319 = pneg %p94
        %p320 = pneg %p118
        %p321 = pneg %p115
        %p322 = pneg %p144
        %p323 = pneg %p141
        %s324 = smul.u32 16, %s19
        %p325 = scmp.lt.s32.totalorder %s324, 31
        %s326 = scalar_select %p325, %s324, 31
        %s327 = smul.addr %s326, 4
        %s328 = scalar_lea.vmem %s4, %s327
        %s329 = smul.u32 16, %s19
        %s330 = smul.u32 16, %s20
        %p331 = scmp.lt.s32.totalorder %s330, 31
        %s332 = scalar_select %p331, %s330, 31
        %s333 = smul.addr %s332, 4
        %s334 = scalar_lea.vmem %s1, %s333
        %s335 = smul.u32 16, %s20
        %s336 = smul.u32 16, %s19
        %p337 = scmp.lt.s32.totalorder %s336, 31
        %s338 = scalar_select %p337, %s336, 31
        %s339 = smul.addr %s338, 4
        %s340 = scalar_lea.vmem %s4, %s339
        %s341 = smul.u32 16, %s19
        %p343 = scmp.eq.s32.totalorder %s20, 0
        // Predicated region
        $region78: #{gcn_model_forward.4} parent=72 // pred_check
          %p344 = pneg %p343
        $region79: #{gcn_model_forward.4} parent=72 // pred_check_branch
          %346 = sbr.rel (%p344) target = $region81
        $region80: #{gcn_model_forward.4} parent=72 // pred_region
          %347 = vst [vmem:[#allocation2] sm:$0xff] 0.0
          %348 = vst [vmem:[#allocation2 + $0x8] sm:$0xff] 0.0
          %349 = vst [vmem:[#allocation2 + $0x10] sm:$0xff] 0.0
          %350 = vst [vmem:[#allocation2 + $0x18] sm:$0xff] 0.0
          %351 = vst [vmem:[#allocation2 + $0x20] sm:$0xff] 0.0
          %352 = vst [vmem:[#allocation2 + $0x28] sm:$0xff] 0.0
          %353 = vst [vmem:[#allocation2 + $0x30] sm:$0xff] 0.0
          %354 = vst [vmem:[#allocation2 + $0x38] sm:$0xff] 0.0
          %355 = vst [vmem:[#allocation2 + $0x40] sm:$0xff] 0.0
          %356 = vst [vmem:[#allocation2 + $0x48] sm:$0xff] 0.0
          %357 = vst [vmem:[#allocation2 + $0x50] sm:$0xff] 0.0
          %358 = vst [vmem:[#allocation2 + $0x58] sm:$0xff] 0.0
          %359 = vst [vmem:[#allocation2 + $0x60] sm:$0xff] 0.0
          %360 = vst [vmem:[#allocation2 + $0x68] sm:$0xff] 0.0
          %361 = vst [vmem:[#allocation2 + $0x70] sm:$0xff] 0.0
          %362 = vst [vmem:[#allocation2 + $0x78] sm:$0xff] 0.0
        $region81: #{gcn_model_forward.4} parent=72 // pred_fallthru
          _
        %v363 = vld [vmem:[#allocation2] sm:$0xff]
        %v364 = vld [vmem:[#allocation2 + $0x8] sm:$0xff]
        %v365 = vld [vmem:[#allocation2 + $0x10] sm:$0xff]
        %v366 = vld [vmem:[#allocation2 + $0x18] sm:$0xff]
        %v367 = vld [vmem:[#allocation2 + $0x20] sm:$0xff]
        %v368 = vld [vmem:[#allocation2 + $0x28] sm:$0xff]
        %v369 = vld [vmem:[#allocation2 + $0x30] sm:$0xff]
        %v370 = vld [vmem:[#allocation2 + $0x38] sm:$0xff]
        %v371 = vld [vmem:[#allocation2 + $0x40] sm:$0xff]
        %v372 = vld [vmem:[#allocation2 + $0x48] sm:$0xff]
        %v373 = vld [vmem:[#allocation2 + $0x50] sm:$0xff]
        %v374 = vld [vmem:[#allocation2 + $0x58] sm:$0xff]
        %v375 = vld [vmem:[#allocation2 + $0x60] sm:$0xff]
        %v376 = vld [vmem:[#allocation2 + $0x68] sm:$0xff]
        %v377 = vld [vmem:[#allocation2 + $0x70] sm:$0xff]
        %v378 = vld [vmem:[#allocation2 + $0x78] sm:$0xff]
        %v379 = vld [vmem:[%s301] sm:$0xf]
        %v380 = vld [vmem:[%s301 + $0x4] sm:$0xf]
        %v381 = vld [vmem:[%s301 + $0x8] sm:$0xf]
        %v382 = vld [vmem:[%s301 + $0xc] sm:$0xf]
        %v383 = vld [vmem:[%s301 + $0x10] sm:$0xf]
        %v384 = vld [vmem:[%s301 + $0x14] sm:$0xf]
        %v385 = vld [vmem:[%s301 + $0x18] sm:$0xf]
        %v386 = vld [vmem:[%s301 + $0x1c] sm:$0xf]
        %v387 = vld [vmem:[%s301 + $0x20] sm:$0xf]
        %v388 = vld [vmem:[%s301 + $0x24] sm:$0xf]
        %v389 = vld [vmem:[%s301 + $0x28] sm:$0xf]
        %v390 = vld [vmem:[%s301 + $0x2c] sm:$0xf]
        %v391 = vld [vmem:[%s301 + $0x30] sm:$0xf]
        %v392 = vld [vmem:[%s301 + $0x34] sm:$0xf]
        %v393 = vld [vmem:[%s301 + $0x38] sm:$0xf]
        %v394 = vld [vmem:[%s301 + $0x3c] sm:$0xf]
        %v395 = vld [vmem:[%s334] sm:$0xf]
        %v396 = vld [vmem:[%s334 + $0x4] sm:$0xf]
        %v397 = vld [vmem:[%s334 + $0x8] sm:$0xf]
        %v398 = vld [vmem:[%s334 + $0xc] sm:$0xf]
        %v399 = vld [vmem:[%s334 + $0x10] sm:$0xf]
        %v400 = vld [vmem:[%s334 + $0x14] sm:$0xf]
        %v401 = vld [vmem:[%s334 + $0x18] sm:$0xf]
        %v402 = vld [vmem:[%s334 + $0x1c] sm:$0xf]
        %v403 = vld [vmem:[%s334 + $0x20] sm:$0xf]
        %v404 = vld [vmem:[%s334 + $0x24] sm:$0xf]
        %v405 = vld [vmem:[%s334 + $0x28] sm:$0xf]
        %v406 = vld [vmem:[%s334 + $0x2c] sm:$0xf]
        %v407 = vld [vmem:[%s334 + $0x30] sm:$0xf]
        %v408 = vld [vmem:[%s334 + $0x34] sm:$0xf]
        %v409 = vld [vmem:[%s334 + $0x38] sm:$0xf]
        %v410 = vld [vmem:[%s334 + $0x3c] sm:$0xf]
        %v427 = vunpack.c.l.b16 %v379
        %v428 = vunpack.c.l.b16 %v380
        %v429 = vunpack.c.l.b16 %v381
        %v430 = vunpack.c.l.b16 %v382
        %v431 = vunpack.c.l.b16 %v383
        %v432 = vunpack.c.l.b16 %v384
        %v433 = vunpack.c.l.b16 %v385
        %v434 = vunpack.c.l.b16 %v386
        %v435 = vunpack.c.l.b16 %v387
        %v436 = vunpack.c.l.b16 %v388
        %v437 = vunpack.c.l.b16 %v389
        %v438 = vunpack.c.l.b16 %v390
        %v439 = vunpack.c.l.b16 %v391
        %v440 = vunpack.c.l.b16 %v392
        %v441 = vunpack.c.l.b16 %v393
        %v442 = vunpack.c.l.b16 %v394
        %v443 = vpack.c.b16 %v428, %v427
        %v444 = vpack.c.b16 %v430, %v429
        %v445 = vpack.c.b16 %v432, %v431
        %v446 = vpack.c.b16 %v434, %v433
        %v447 = vpack.c.b16 %v436, %v435
        %v448 = vpack.c.b16 %v438, %v437
        %v449 = vpack.c.b16 %v440, %v439
        %v450 = vpack.c.b16 %v442, %v441
        %v475 = vunpack.c.l.b16 %v395
        %v476 = vunpack.c.l.b16 %v396
        %v477 = vunpack.c.l.b16 %v397
        %v478 = vunpack.c.l.b16 %v398
        %v479 = vunpack.c.l.b16 %v399
        %v480 = vunpack.c.l.b16 %v400
        %v481 = vunpack.c.l.b16 %v401
        %v482 = vunpack.c.l.b16 %v402
        %v483 = vunpack.c.l.b16 %v403
        %v484 = vunpack.c.l.b16 %v404
        %v485 = vunpack.c.l.b16 %v405
        %v486 = vunpack.c.l.b16 %v406
        %v487 = vunpack.c.l.b16 %v407
        %v488 = vunpack.c.l.b16 %v408
        %v489 = vunpack.c.l.b16 %v409
        %v490 = vunpack.c.l.b16 %v410
        %v491 = vpack.c.b16 %v476, %v475
        %v492 = vpack.c.b16 %v478, %v477
        %v493 = vpack.c.b16 %v480, %v479
        %v494 = vpack.c.b16 %v482, %v481
        %v495 = vpack.c.b16 %v484, %v483
        %v496 = vpack.c.b16 %v486, %v485
        %v497 = vpack.c.b16 %v488, %v487
        %v498 = vpack.c.b16 %v490, %v489
        %507 = vmatprep.subr.bf16.mxu0 0
        %508 = vmatpush1.bf16.msra.mxu0 %v498
        %509 = vmatprep.subr.bf16.mxu0 0
        %510 = vmatpush1.bf16.msra.mxu0 %v497
        %511 = vmatprep.subr.bf16.mxu0 0
        %512 = vmatpush1.bf16.msra.mxu0 %v496
        %513 = vmatprep.subr.bf16.mxu0 0
        %514 = vmatpush1.bf16.msra.mxu0 %v495
        %515 = vmatprep.subr.bf16.mxu0 0
        %516 = vmatpush1.bf16.msra.mxu0 %v494
        %517 = vmatprep.subr.bf16.mxu0 0
        %518 = vmatpush1.bf16.msra.mxu0 %v493
        %519 = vmatprep.subr.bf16.mxu0 0
        %520 = vmatpush1.bf16.msra.mxu0 %v492
        %521 = vmatprep.subr.bf16.mxu0 0
        %522 = vmatpush1.bf16.msra.mxu0 %v491
        %523 = vmatprep.subr.bf16.mxu0 0
        %524 = vmatpush2.bf16.msra.mxu0 0
        %525 = vmatprep.subr.bf16.mxu0 0
        %526 = vmatpush2.bf16.msra.mxu0 0
        %527 = vmatprep.subr.bf16.mxu0 0
        %528 = vmatpush2.bf16.msra.mxu0 0
        %529 = vmatprep.subr.bf16.mxu0 0
        %530 = vmatpush2.bf16.msra.mxu0 0
        %531 = vmatprep.subr.bf16.mxu0 0
        %532 = vmatpush2.bf16.msra.mxu0 0
        %533 = vmatprep.subr.bf16.mxu0 0
        %534 = vmatpush2.bf16.msra.mxu0 0
        %535 = vmatprep.subr.bf16.mxu0 0
        %536 = vmatpush2.bf16.msra.mxu0 0
        %537 = vmatprep.subr.bf16.mxu0 0
        %538 = vmatpush2.bf16.msra.mxu0 0
        %539 = vmatprep.mubr.bf16.mxu0 0
        %540 = vmatmul.mubr.bf16.gmra.mxu0 %v443
        %v541 = vpop.f32.mrf.mxu0
        %v542 = vadd.f32 0.0, %v541
        %v543 = vpop.f32.mrf.mxu0
        %v544 = vpop.f32.mrf.mxu0
        %v545 = vadd.f32 0.0, %v544
        %v546 = vpop.f32.mrf.mxu0
        %547 = vmatprep.mubr.bf16.mxu0 0
        %548 = vmatmul.mubr.bf16.gmra.mxu0 %v444
        %v549 = vpop.f32.mrf.mxu0
        %v550 = vadd.f32 0.0, %v549
        %v551 = vpop.f32.mrf.mxu0
        %v552 = vpop.f32.mrf.mxu0
        %v553 = vadd.f32 0.0, %v552
        %v554 = vpop.f32.mrf.mxu0
        %555 = vmatprep.mubr.bf16.mxu0 0
        %556 = vmatmul.mubr.bf16.gmra.mxu0 %v445
        %v557 = vpop.f32.mrf.mxu0
        %v558 = vadd.f32 0.0, %v557
        %v559 = vpop.f32.mrf.mxu0
        %v560 = vpop.f32.mrf.mxu0
        %v561 = vadd.f32 0.0, %v560
        %v562 = vpop.f32.mrf.mxu0
        %563 = vmatprep.mubr.bf16.mxu0 0
        %564 = vmatmul.mubr.bf16.gmra.mxu0 %v446
        %v565 = vpop.f32.mrf.mxu0
        %v566 = vadd.f32 0.0, %v565
        %v567 = vpop.f32.mrf.mxu0
        %v568 = vpop.f32.mrf.mxu0
        %v569 = vadd.f32 0.0, %v568
        %v570 = vpop.f32.mrf.mxu0
        %571 = vmatprep.mubr.bf16.mxu0 0
        %572 = vmatmul.mubr.bf16.gmra.mxu0 %v447
        %v573 = vpop.f32.mrf.mxu0
        %v574 = vadd.f32 0.0, %v573
        %v575 = vpop.f32.mrf.mxu0
        %v576 = vpop.f32.mrf.mxu0
        %v577 = vadd.f32 0.0, %v576
        %v578 = vpop.f32.mrf.mxu0
        %579 = vmatprep.mubr.bf16.mxu0 0
        %580 = vmatmul.mubr.bf16.gmra.mxu0 %v448
        %v581 = vpop.f32.mrf.mxu0
        %v582 = vadd.f32 0.0, %v581
        %v583 = vpop.f32.mrf.mxu0
        %v584 = vpop.f32.mrf.mxu0
        %v585 = vadd.f32 0.0, %v584
        %v586 = vpop.f32.mrf.mxu0
        %587 = vmatprep.mubr.bf16.mxu0 0
        %588 = vmatmul.mubr.bf16.gmra.mxu0 %v449
        %v589 = vpop.f32.mrf.mxu0
        %v590 = vadd.f32 0.0, %v589
        %v591 = vpop.f32.mrf.mxu0
        %v592 = vpop.f32.mrf.mxu0
        %v593 = vadd.f32 0.0, %v592
        %v594 = vpop.f32.mrf.mxu0
        %595 = vmatprep.mubr.bf16.mxu0 0
        %596 = vmatmul.mubr.bf16.gmra.mxu0 %v450
        %v597 = vpop.f32.mrf.mxu0
        %v598 = vadd.f32 0.0, %v597
        %v599 = vpop.f32.mrf.mxu0
        %v600 = vpop.f32.mrf.mxu0
        %v601 = vadd.f32 0.0, %v600
        %v602 = vpop.f32.mrf.mxu0
        %603 = vdwg.mxu0
        %v604 = vadd.f32 %v363, %v542
        %v605 = vadd.f32 %v364, %v545
        %v606 = vadd.f32 %v365, %v550
        %v607 = vadd.f32 %v366, %v553
        %v608 = vadd.f32 %v367, %v558
        %v609 = vadd.f32 %v368, %v561
        %v610 = vadd.f32 %v369, %v566
        %v611 = vadd.f32 %v370, %v569
        %v612 = vadd.f32 %v371, %v574
        %v613 = vadd.f32 %v372, %v577
        %v614 = vadd.f32 %v373, %v582
        %v615 = vadd.f32 %v374, %v585
        %v616 = vadd.f32 %v375, %v590
        %v617 = vadd.f32 %v376, %v593
        %v618 = vadd.f32 %v377, %v598
        %v619 = vadd.f32 %v378, %v601
        %620 = vst [vmem:[#allocation2] sm:$0xff] %v604
        %621 = vst [vmem:[#allocation2 + $0x8] sm:$0xff] %v605
        %622 = vst [vmem:[#allocation2 + $0x10] sm:$0xff] %v606
        %623 = vst [vmem:[#allocation2 + $0x18] sm:$0xff] %v607
        %624 = vst [vmem:[#allocation2 + $0x20] sm:$0xff] %v608
        %625 = vst [vmem:[#allocation2 + $0x28] sm:$0xff] %v609
        %626 = vst [vmem:[#allocation2 + $0x30] sm:$0xff] %v610
        %627 = vst [vmem:[#allocation2 + $0x38] sm:$0xff] %v611
        %628 = vst [vmem:[#allocation2 + $0x40] sm:$0xff] %v612
        %629 = vst [vmem:[#allocation2 + $0x48] sm:$0xff] %v613
        %630 = vst [vmem:[#allocation2 + $0x50] sm:$0xff] %v614
        %631 = vst [vmem:[#allocation2 + $0x58] sm:$0xff] %v615
        %632 = vst [vmem:[#allocation2 + $0x60] sm:$0xff] %v616
        %633 = vst [vmem:[#allocation2 + $0x68] sm:$0xff] %v617
        %634 = vst [vmem:[#allocation2 + $0x70] sm:$0xff] %v618
        %635 = vst [vmem:[#allocation2 + $0x78] sm:$0xff] %v619
        %p636 = scmp.eq.s32.totalorder %s20, 1
        // Predicated region
        $region82: #{gcn_model_forward.4} parent=72 // pred_check
          %p637 = pneg %p636
        $region83: #{gcn_model_forward.4} parent=72 // pred_check_branch
          %639 = sbr.rel (%p637) target = $region85
        $region84: #{gcn_model_forward.4} parent=72 // pred_region
          %v640 = vld [vmem:[#allocation2] sm:$0xff]
          %v641 = vld [vmem:[#allocation2 + $0x8] sm:$0xff]
          %v642 = vld [vmem:[#allocation2 + $0x10] sm:$0xff]
          %v643 = vld [vmem:[#allocation2 + $0x18] sm:$0xff]
          %v644 = vld [vmem:[#allocation2 + $0x20] sm:$0xff]
          %v645 = vld [vmem:[#allocation2 + $0x28] sm:$0xff]
          %v646 = vld [vmem:[#allocation2 + $0x30] sm:$0xff]
          %v647 = vld [vmem:[#allocation2 + $0x38] sm:$0xff]
          %v648 = vld [vmem:[#allocation2 + $0x40] sm:$0xff]
          %v649 = vld [vmem:[#allocation2 + $0x48] sm:$0xff]
          %v650 = vld [vmem:[#allocation2 + $0x50] sm:$0xff]
          %v651 = vld [vmem:[#allocation2 + $0x58] sm:$0xff]
          %v652 = vld [vmem:[#allocation2 + $0x60] sm:$0xff]
          %v653 = vld [vmem:[#allocation2 + $0x68] sm:$0xff]
          %v654 = vld [vmem:[#allocation2 + $0x70] sm:$0xff]
          %v655 = vld [vmem:[#allocation2 + $0x78] sm:$0xff]
          %v656 = vld [vmem:[%s2] sm:$0xff]
          %v657 = vld [vmem:[%s2 + $0x8] sm:$0xff]
          %v658 = vld [vmem:[%s2 + $0x10] sm:$0xff]
          %v659 = vld [vmem:[%s2 + $0x18] sm:$0xff]
          %v660 = vld [vmem:[%s2 + $0x20] sm:$0xff]
          %v661 = vld [vmem:[%s2 + $0x28] sm:$0xff]
          %v662 = vld [vmem:[%s2 + $0x30] sm:$0xff]
          %v663 = vld [vmem:[%s2 + $0x38] sm:$0xff]
          %v664 = vld [vmem:[%s2 + $0x40] sm:$0xff]
          %v665 = vld [vmem:[%s2 + $0x48] sm:$0xff]
          %v666 = vld [vmem:[%s2 + $0x50] sm:$0xff]
          %v667 = vld [vmem:[%s2 + $0x58] sm:$0xff]
          %v668 = vld [vmem:[%s2 + $0x60] sm:$0xff]
          %v669 = vld [vmem:[%s2 + $0x68] sm:$0xff]
          %v670 = vld [vmem:[%s2 + $0x70] sm:$0xff]
          %v671 = vld [vmem:[%s2 + $0x78] sm:$0xff]
          %v672 = vld [vmem:[%s3] sm:$0x1]
          %v674 = vlaneseq
          %v675 = vshrl.u32 %v674, 7
          %v676 = vsub.s32 0, %v675
          %v677 = vrot.slane %v672, %v676
          %679 = vmatprep.subr.mxu0 0.0
          %680 = vmatpush1.msra.mxu0 %v671
          %681 = vmatprep.subr.mxu0 0.0
          %682 = vmatpush1.msra.mxu0 %v670
          %683 = vmatprep.subr.mxu0 0.0
          %684 = vmatpush1.msra.mxu0 %v669
          %685 = vmatprep.subr.mxu0 0.0
          %686 = vmatpush1.msra.mxu0 %v668
          %687 = vmatprep.subr.mxu0 0.0
          %688 = vmatpush1.msra.mxu0 %v667
          %689 = vmatprep.subr.mxu0 0.0
          %690 = vmatpush1.msra.mxu0 %v666
          %691 = vmatprep.subr.mxu0 0.0
          %692 = vmatpush1.msra.mxu0 %v665
          %693 = vmatprep.subr.mxu0 0.0
          %694 = vmatpush1.msra.mxu0 %v664
          %695 = vmatprep.subr.mxu0 0.0
          %696 = vmatpush1.msra.mxu0 %v663
          %697 = vmatprep.subr.mxu0 0.0
          %698 = vmatpush1.msra.mxu0 %v662
          %699 = vmatprep.subr.mxu0 0.0
          %700 = vmatpush1.msra.mxu0 %v661
          %701 = vmatprep.subr.mxu0 0.0
          %702 = vmatpush1.msra.mxu0 %v660
          %703 = vmatprep.subr.mxu0 0.0
          %704 = vmatpush1.msra.mxu0 %v659
          %705 = vmatprep.subr.mxu0 0.0
          %706 = vmatpush1.msra.mxu0 %v658
          %707 = vmatprep.subr.mxu0 0.0
          %708 = vmatpush1.msra.mxu0 %v657
          %709 = vmatprep.subr.mxu0 0.0
          %710 = vmatpush1.msra.mxu0 %v656
          %711 = vmatprep.subr.mxu0 0.0
          %712 = vmatpush2.msra.mxu0 0.0
          %713 = vmatprep.subr.mxu0 0.0
          %714 = vmatpush2.msra.mxu0 0.0
          %715 = vmatprep.subr.mxu0 0.0
          %716 = vmatpush2.msra.mxu0 0.0
          %717 = vmatprep.subr.mxu0 0.0
          %718 = vmatpush2.msra.mxu0 0.0
          %719 = vmatprep.subr.mxu0 0.0
          %720 = vmatpush2.msra.mxu0 0.0
          %721 = vmatprep.subr.mxu0 0.0
          %722 = vmatpush2.msra.mxu0 0.0
          %723 = vmatprep.subr.mxu0 0.0
          %724 = vmatpush2.msra.mxu0 0.0
          %725 = vmatprep.subr.mxu0 0.0
          %726 = vmatpush2.msra.mxu0 0.0
          %727 = vmatprep.subr.mxu0 0.0
          %728 = vmatpush2.msra.mxu0 0.0
          %729 = vmatprep.subr.mxu0 0.0
          %730 = vmatpush2.msra.mxu0 0.0
          %731 = vmatprep.subr.mxu0 0.0
          %732 = vmatpush2.msra.mxu0 0.0
          %733 = vmatprep.subr.mxu0 0.0
          %734 = vmatpush2.msra.mxu0 0.0
          %735 = vmatprep.subr.mxu0 0.0
          %736 = vmatpush2.msra.mxu0 0.0
          %737 = vmatprep.subr.mxu0 0.0
          %738 = vmatpush2.msra.mxu0 0.0
          %739 = vmatprep.subr.mxu0 0.0
          %740 = vmatpush2.msra.mxu0 0.0
          %741 = vmatprep.subr.mxu0 0.0
          %742 = vmatpush2.msra.mxu0 0.0
          %743 = vmatprep.mubr.f32.mxu0 0.0
          %744 = vmatmul.mubr.f32.gmra.mxu0 %v640
          %v745 = vpop.f32.mrf.mxu0
          %v746 = vadd.f32 %v677, %v745
          %v747 = vpop.f32.mrf.mxu0
          %748 = vmatprep.mubr.f32.mxu0 0.0
          %749 = vmatmul.mubr.f32.gmra.mxu0 %v641
          %v750 = vpop.f32.mrf.mxu0
          %v751 = vadd.f32 %v677, %v750
          %v752 = vpop.f32.mrf.mxu0
          %753 = vmatprep.mubr.f32.mxu0 0.0
          %754 = vmatmul.mubr.f32.gmra.mxu0 %v642
          %v755 = vpop.f32.mrf.mxu0
          %v756 = vadd.f32 %v677, %v755
          %v757 = vpop.f32.mrf.mxu0
          %758 = vmatprep.mubr.f32.mxu0 0.0
          %759 = vmatmul.mubr.f32.gmra.mxu0 %v643
          %v760 = vpop.f32.mrf.mxu0
          %v761 = vadd.f32 %v677, %v760
          %v762 = vpop.f32.mrf.mxu0
          %763 = vmatprep.mubr.f32.mxu0 0.0
          %764 = vmatmul.mubr.f32.gmra.mxu0 %v644
          %v765 = vpop.f32.mrf.mxu0
          %v766 = vadd.f32 %v677, %v765
          %v767 = vpop.f32.mrf.mxu0
          %768 = vmatprep.mubr.f32.mxu0 0.0
          %769 = vmatmul.mubr.f32.gmra.mxu0 %v645
          %v770 = vpop.f32.mrf.mxu0
          %v771 = vadd.f32 %v677, %v770
          %v772 = vpop.f32.mrf.mxu0
          %773 = vmatprep.mubr.f32.mxu0 0.0
          %774 = vmatmul.mubr.f32.gmra.mxu0 %v646
          %v775 = vpop.f32.mrf.mxu0
          %v776 = vadd.f32 %v677, %v775
          %v777 = vpop.f32.mrf.mxu0
          %778 = vmatprep.mubr.f32.mxu0 0.0
          %779 = vmatmul.mubr.f32.gmra.mxu0 %v647
          %v780 = vpop.f32.mrf.mxu0
          %v781 = vadd.f32 %v677, %v780
          %v782 = vpop.f32.mrf.mxu0
          %783 = vmatprep.mubr.f32.mxu0 0.0
          %784 = vmatmul.mubr.f32.gmra.mxu0 %v648
          %v785 = vpop.f32.mrf.mxu0
          %v786 = vadd.f32 %v677, %v785
          %v787 = vpop.f32.mrf.mxu0
          %788 = vmatprep.mubr.f32.mxu0 0.0
          %789 = vmatmul.mubr.f32.gmra.mxu0 %v649
          %v790 = vpop.f32.mrf.mxu0
          %v791 = vadd.f32 %v677, %v790
          %v792 = vpop.f32.mrf.mxu0
          %793 = vmatprep.mubr.f32.mxu0 0.0
          %794 = vmatmul.mubr.f32.gmra.mxu0 %v650
          %v795 = vpop.f32.mrf.mxu0
          %v796 = vadd.f32 %v677, %v795
          %v797 = vpop.f32.mrf.mxu0
          %798 = vmatprep.mubr.f32.mxu0 0.0
          %799 = vmatmul.mubr.f32.gmra.mxu0 %v651
          %v800 = vpop.f32.mrf.mxu0
          %v801 = vadd.f32 %v677, %v800
          %v802 = vpop.f32.mrf.mxu0
          %803 = vmatprep.mubr.f32.mxu0 0.0
          %804 = vmatmul.mubr.f32.gmra.mxu0 %v652
          %v805 = vpop.f32.mrf.mxu0
          %v806 = vadd.f32 %v677, %v805
          %v807 = vpop.f32.mrf.mxu0
          %808 = vmatprep.mubr.f32.mxu0 0.0
          %809 = vmatmul.mubr.f32.gmra.mxu0 %v653
          %v810 = vpop.f32.mrf.mxu0
          %v811 = vadd.f32 %v677, %v810
          %v812 = vpop.f32.mrf.mxu0
          %813 = vmatprep.mubr.f32.mxu0 0.0
          %814 = vmatmul.mubr.f32.gmra.mxu0 %v654
          %v815 = vpop.f32.mrf.mxu0
          %v816 = vadd.f32 %v677, %v815
          %v817 = vpop.f32.mrf.mxu0
          %818 = vmatprep.mubr.f32.mxu0 0.0
          %819 = vmatmul.mubr.f32.gmra.mxu0 %v655
          %v820 = vpop.f32.mrf.mxu0
          %v821 = vadd.f32 %v677, %v820
          %v822 = vpop.f32.mrf.mxu0
          %823 = vdwg.mxu0
          %v824 = vmax.f32 %v746, 0.0
          %v825 = vmax.f32 %v751, 0.0
          %v826 = vmax.f32 %v756, 0.0
          %v827 = vmax.f32 %v761, 0.0
          %v828 = vmax.f32 %v766, 0.0
          %v829 = vmax.f32 %v771, 0.0
          %v830 = vmax.f32 %v776, 0.0
          %v831 = vmax.f32 %v781, 0.0
          %v832 = vmax.f32 %v786, 0.0
          %v833 = vmax.f32 %v791, 0.0
          %v834 = vmax.f32 %v796, 0.0
          %v835 = vmax.f32 %v801, 0.0
          %v836 = vmax.f32 %v806, 0.0
          %v837 = vmax.f32 %v811, 0.0
          %v838 = vmax.f32 %v816, 0.0
          %v839 = vmax.f32 %v821, 0.0
          %v840 = vpack.c.bf16 %v825, %v824
          %v841 = vpack.c.bf16 %v827, %v826
          %v842 = vpack.c.bf16 %v829, %v828
          %v843 = vpack.c.bf16 %v831, %v830
          %v844 = vpack.c.bf16 %v833, %v832
          %v845 = vpack.c.bf16 %v835, %v834
          %v846 = vpack.c.bf16 %v837, %v836
          %v847 = vpack.c.bf16 %v839, %v838
          %v856 = vunpack.c.l.b16 %v840
          %v857 = vunpack.c.h.b16 %v840
          %v858 = vunpack.c.l.b16 %v841
          %v859 = vunpack.c.h.b16 %v841
          %v860 = vunpack.c.l.b16 %v842
          %v861 = vunpack.c.h.b16 %v842
          %v862 = vunpack.c.l.b16 %v843
          %v863 = vunpack.c.h.b16 %v843
          %v864 = vunpack.c.l.b16 %v844
          %v865 = vunpack.c.h.b16 %v844
          %v866 = vunpack.c.l.b16 %v845
          %v867 = vunpack.c.h.b16 %v845
          %v868 = vunpack.c.l.b16 %v846
          %v869 = vunpack.c.h.b16 %v846
          %v870 = vunpack.c.l.b16 %v847
          %v871 = vunpack.c.h.b16 %v847
          %v872 = vpack.c.b16 %v856, %v856
          %v873 = vpack.c.b16 %v857, %v857
          %v874 = vpack.c.b16 %v858, %v858
          %v875 = vpack.c.b16 %v859, %v859
          %v876 = vpack.c.b16 %v860, %v860
          %v877 = vpack.c.b16 %v861, %v861
          %v878 = vpack.c.b16 %v862, %v862
          %v879 = vpack.c.b16 %v863, %v863
          %v880 = vpack.c.b16 %v864, %v864
          %v881 = vpack.c.b16 %v865, %v865
          %v882 = vpack.c.b16 %v866, %v866
          %v883 = vpack.c.b16 %v867, %v867
          %v884 = vpack.c.b16 %v868, %v868
          %v885 = vpack.c.b16 %v869, %v869
          %v886 = vpack.c.b16 %v870, %v870
          %v887 = vpack.c.b16 %v871, %v871
          %904 = vst [vmem:[%s340] sm:$0xf] %v872
          %905 = vst [vmem:[%s340 + $0x4] sm:$0xf] %v873
          %906 = vst [vmem:[%s340 + $0x8] sm:$0xf] %v874
          %907 = vst [vmem:[%s340 + $0xc] sm:$0xf] %v875
          %908 = vst [vmem:[%s340 + $0x10] sm:$0xf] %v876
          %909 = vst [vmem:[%s340 + $0x14] sm:$0xf] %v877
          %910 = vst [vmem:[%s340 + $0x18] sm:$0xf] %v878
          %911 = vst [vmem:[%s340 + $0x1c] sm:$0xf] %v879
          %912 = vst [vmem:[%s340 + $0x20] sm:$0xf] %v880
          %913 = vst [vmem:[%s340 + $0x24] sm:$0xf] %v881
          %914 = vst [vmem:[%s340 + $0x28] sm:$0xf] %v882
          %915 = vst [vmem:[%s340 + $0x2c] sm:$0xf] %v883
          %916 = vst [vmem:[%s340 + $0x30] sm:$0xf] %v884
          %917 = vst [vmem:[%s340 + $0x34] sm:$0xf] %v885
          %918 = vst [vmem:[%s340 + $0x38] sm:$0xf] %v886
          %919 = vst [vmem:[%s340 + $0x3c] sm:$0xf] %v887
        $region85: #{gcn_model_forward.4} parent=72 // pred_fallthru
          _
        %s920 = smul.u32 16, %s19
        %p921 = scmp.lt.s32.totalorder %s920, 31
        %s922 = scalar_select %p921, %s920, 31
        %s923 = smul.addr %s922, 4
        %s924 = scalar_lea.vmem %s4, %s923
        // Predicated region
        $region86: #{gcn_model_forward.4} parent=72 // pred_check
          %p925 = pneg %p141
        $region87: #{gcn_model_forward.4} parent=72 // pred_check_branch
          %927 = sbr.rel (%p925) target = $region89
        $region88: #{gcn_model_forward.4} parent=72 // pred_region
          %s928 = smul.u32 16, %s19
        $region89: #{gcn_model_forward.4} parent=72 // pred_fallthru
          _
      $region73: #{gcn_model_forward.4} parent=5 // pred_fallthru
        _
      %p929 = scmp.le.s32.totalorder 2, %s10
      // Predicated region
      $region90: #{gcn_model_forward.4} parent=5 // pred_check
        %p930 = pneg %p929
      $region91: #{gcn_model_forward.4} parent=5 // pred_check_branch
        %932 = sbr.rel (%p930) target = $region93
      $region92: #{gcn_model_forward.4} parent=5 // pred_region
        %s933 = ssub.s32 %s10, 2
        // Predicated region
        $region94: #{gcn_model_forward.4} parent=92 // pred_check
          %p934 = pneg %p147
        $region95: #{gcn_model_forward.4} parent=92 // pred_check_branch
          %936 = sbr.rel (%p934) target = $region97
        $region96: #{gcn_model_forward.4} parent=92 // pred_region
          %s937 = smul.u32 16, %s21
          %p938 = scmp.lt.s32.totalorder %s937, 31
          %s939 = scalar_select %p938, %s937, 31
          %s940 = smul.addr %s939, 4
          %s941 = scalar_lea.vmem %s4, %s940
        $region97: #{gcn_model_forward.4} parent=92 // pred_fallthru
          _
      $region93: #{gcn_model_forward.4} parent=5 // pred_fallthru
        _
    $region6: #{gcn_model_forward.4} parent=1 // loop_footer
      %s14 = sadd.s32 1, %s10
    $region7: #{gcn_model_forward.4} parent=1 // loop_footer_branch
      %9 = sbr.rel target = $region3
    $region8: #{gcn_model_forward.4} parent=1 // loop_exit
      _

</llo_original>
